<compile_context>
chip_gen: v5e
topology: v5e:2x2
jax: 0.10.0
libtpu: 0.0.40
codegen_flags: <defaults>
</compile_context>

<pallas_src>
import functools

import jax
import jax.numpy as jnp
from jax import lax
from jax.experimental import pallas as pl
from jax.experimental.pallas import tpu as pltpu

LANE = 128


def _ceil_to(n, m):
    return ((n + m - 1) // m) * m


def decoder_kernel(hidden_size,                     # static (closure) : real H
                   tok_ref,                         # VMEM : (TB, 1) int32 token ids
                   h_ref, c_ref,                    # VMEM : (TB, H_pad) f32 state
                   table_ref,                       # VMEM : (V_pad, E_pad) bf16 embedding table
                   wih_ref, whh_ref, b_ref,         # VMEM : (E_pad,4H_pad) bf16, (H_pad,4H_pad) bf16, (1,4H_pad) f32
                   wfc_ref, bfc_ref,                # VMEM : (H_pad, O_pad) bf16, (1, O_pad) f32
                   pred_ref, hout_ref, cout_ref):   # VMEM outputs (lane-dense)
    TB, H_pad = h_ref.shape
    V_pad = table_ref.shape[0]

    # --- Embedding gather as a one-hot MXU matmul (table is VMEM-resident). ---
    tok = tok_ref[...]                                                # (TB, 1) int32
    vocab_iota = lax.broadcasted_iota(jnp.int32, (TB, V_pad), 1)
    onehot = (vocab_iota == tok).astype(jnp.bfloat16)                 # (TB, V_pad)
    emb = jnp.dot(onehot, table_ref[...],
                  preferred_element_type=jnp.float32).astype(jnp.bfloat16)  # (TB, E_pad)

    h = h_ref[...]
    c = c_ref[...]

    # --- Gate matmuls, split (no concat temp): emb @ W_ih^T + h @ W_hh^T + b. ---
    gates = (jnp.dot(emb, wih_ref[...], preferred_element_type=jnp.float32)
             + jnp.dot(h.astype(jnp.bfloat16), whh_ref[...],
                       preferred_element_type=jnp.float32)
             + b_ref[...])                                            # (TB, 4*H_pad) f32

    # Gate blocks are 128-lane aligned; PyTorch gate order [i, f, g, o].
    i_g = jax.nn.sigmoid(gates[:, 0 * H_pad:1 * H_pad])
    f_g = jax.nn.sigmoid(gates[:, 1 * H_pad:2 * H_pad])
    g_g = jnp.tanh(gates[:, 2 * H_pad:3 * H_pad])
    o_g = jax.nn.sigmoid(gates[:, 3 * H_pad:4 * H_pad])

    c_new = f_g * c + i_g * g_g
    h_new = o_g * jnp.tanh(c_new)

    # Keep the carried state's pad lanes exactly zero, independent of the input padding.
    lane_ok = lax.broadcasted_iota(jnp.int32, (TB, H_pad), 1) < hidden_size
    c_new = jnp.where(lane_ok, c_new, 0.0)
    h_new = jnp.where(lane_ok, h_new, 0.0)

    pred = jnp.dot(h_new.astype(jnp.bfloat16), wfc_ref[...],
                   preferred_element_type=jnp.float32) + bfc_ref[...]

    # Lane-dense (multiple-of-128) unmasked stores.
    pred_ref[...] = pred
    hout_ref[...] = h_new
    cout_ref[...] = c_new


def init_params(key, vocab_size, emb_size, hidden_size, output_size):
    V, E, H, O = vocab_size, emb_size, hidden_size, output_size
    V_pad = _ceil_to(V, LANE)
    E_pad, H_pad, O_pad = _ceil_to(E, LANE), _ceil_to(H, LANE), _ceil_to(O, LANE)

    ks = jax.random.split(key, 7)
    scale = 1.0 / jnp.sqrt(H)
    emb_table = jax.random.normal(ks[0], (V, E), jnp.float32) * 0.1
    w_ih = jax.random.uniform(ks[1], (4 * H, E), jnp.float32, -scale, scale)
    w_hh = jax.random.uniform(ks[2], (4 * H, H), jnp.float32, -scale, scale)
    b_ih = jax.random.uniform(ks[3], (4 * H,), jnp.float32, -scale, scale)
    b_hh = jax.random.uniform(ks[4], (4 * H,), jnp.float32, -scale, scale)
    w_fc = jax.random.uniform(ks[5], (O, H), jnp.float32, -scale, scale)
    b_fc = jax.random.uniform(ks[6], (O,), jnp.float32, -scale, scale)

    # Gate-major, lane-padded layout: each PyTorch gate block [i, f, g, o] occupies a whole
    # multiple of 128 lanes so gate slicing in the kernel is vreg-aligned.
    def gate_major(w, in_dim, in_pad):
        w = w.reshape(4, H, in_dim)
        w = jnp.pad(w, ((0, 0), (0, H_pad - H), (0, in_pad - in_dim)))
        return w.transpose(2, 0, 1).reshape(in_pad, 4 * H_pad)

    w_ih_t = gate_major(w_ih, E, E_pad).astype(jnp.bfloat16)          # (E_pad, 4*H_pad)
    w_hh_t = gate_major(w_hh, H, H_pad).astype(jnp.bfloat16)          # (H_pad, 4*H_pad)

    b_gates = (b_ih + b_hh).reshape(4, H)
    b_gates = jnp.pad(b_gates, ((0, 0), (0, H_pad - H))).reshape(1, 4 * H_pad)

    w_fc_t = jnp.pad(w_fc.T, ((0, H_pad - H), (0, O_pad - O))).astype(jnp.bfloat16)
    b_fc_p = jnp.pad(b_fc, (0, O_pad - O)).reshape(1, O_pad)

    table = jnp.pad(emb_table, ((0, V_pad - V), (0, E_pad - E))).astype(jnp.bfloat16)

    return {
        "table": table,                # (V_pad, E_pad) bf16, VMEM-resident in the kernel
        "w_ih_t": w_ih_t, "w_hh_t": w_hh_t, "b_gates": b_gates,
        "w_fc_t": w_fc_t, "b_fc": b_fc_p,
        "sizes": (V, E, H, O),
        # f32 originals for the pure-JAX reference check
        "ref": {"emb": emb_table, "w_ih": w_ih, "w_hh": w_hh,
                "b_ih": b_ih, "b_hh": b_hh, "w_fc": w_fc, "b_fc": b_fc},
    }


def decoder_step_padded(x_tokens, h_pad, c_pad, params):
    """Core API: padded state (B, H_pad) in / out, updated in place via aliasing."""
    table = params["table"]
    w_ih_t, w_hh_t = params["w_ih_t"], params["w_hh_t"]
    b_gates, w_fc_t, b_fc = params["b_gates"], params["w_fc_t"], params["b_fc"]
    _, _, H, _ = params["sizes"]

    B, H_pad = h_pad.shape
    V_pad, E_pad = table.shape
    O_pad = w_fc_t.shape[1]

    # Batch tile: a "parallel" leading grid axis lets v7x's two TensorCores split batch.
    TB = LANE if B % LANE == 0 else B
    grid = (B // TB,)

    tok2d = x_tokens.reshape(B, 1).astype(jnp.int32)

    kernel = functools.partial(decoder_kernel, H)

    def batch_spec(shape):
        return pl.BlockSpec(shape, lambda i: (i, 0))

    def const_spec(shape):
        return pl.BlockSpec(shape, lambda i: (0, 0))

    pred_p, h_new, c_new = pl.pallas_call(
        kernel,
        grid=grid,
        in_specs=[
            batch_spec((TB, 1)),                      # token ids
            batch_spec((TB, H_pad)),                  # h
            batch_spec((TB, H_pad)),                  # c
            const_spec((V_pad, E_pad)),               # embedding table (VMEM)
            const_spec((E_pad, 4 * H_pad)),           # W_ih^T
            const_spec((H_pad, 4 * H_pad)),           # W_hh^T
            const_spec((1, 4 * H_pad)),               # gate bias
            const_spec((H_pad, O_pad)),               # W_fc^T
            const_spec((1, O_pad)),                   # fc bias
        ],
        out_specs=[
            batch_spec((TB, O_pad)),                  # prediction
            batch_spec((TB, H_pad)),                  # h_new
            batch_spec((TB, H_pad)),                  # c_new
        ],
        out_shape=[
            jax.ShapeDtypeStruct((B, O_pad), jnp.float32),
            jax.ShapeDtypeStruct((B, H_pad), jnp.float32),
            jax.ShapeDtypeStruct((B, H_pad), jnp.float32),
        ],
        # In-place LSTM state update: h -> h_new, c -> c_new (operand indices).
        input_output_aliases={1: 1, 2: 2},
        compiler_params=pltpu.CompilerParams(dimension_semantics=("parallel",)),
    )(tok2d, h_pad, c_pad, table, w_ih_t, w_hh_t, b_gates, w_fc_t, b_fc)

    return pred_p, h_new, c_new


def decoder_step(x_tokens, hidden, cell, params):
    """Mirrors Decoder.forward for one decode step.

    x_tokens: (B,) int32 ids; hidden, cell: (1, B, H) f32.
    Returns (prediction (B, O), hidden (1, B, H), cell (1, B, H)).
    For autoregressive decoding, prefer decoder_step_padded and keep the state padded
    across steps (avoids per-step pad/slice copies that defeat the in-place aliasing).
    """
    _, _, H, O = params["sizes"]
    H_pad = params["w_hh_t"].shape[0]
    h_pad = jnp.pad(hidden[0], ((0, 0), (0, H_pad - H)))
    c_pad = jnp.pad(cell[0], ((0, 0), (0, H_pad - H)))
    pred_p, h_new, c_new = decoder_step_padded(x_tokens, h_pad, c_pad, params)
    return pred_p[:, :O], h_new[None, :, :H], c_new[None, :, :H]


def decoder_step_ref(x_tokens, hidden, cell, params):
    """Pure-JAX f32 reference matching the PyTorch forward."""
    r = params["ref"]
    emb = r["emb"][x_tokens]                                   # (B, E)
    h, c = hidden[0], cell[0]
    H = h.shape[1]
    gates = emb @ r["w_ih"].T + h @ r["w_hh"].T + r["b_ih"] + r["b_hh"]
    i = jax.nn.sigmoid(gates[:, 0 * H:1 * H])
    f = jax.nn.sigmoid(gates[:, 1 * H:2 * H])
    g = jnp.tanh(gates[:, 2 * H:3 * H])
    o = jax.nn.sigmoid(gates[:, 3 * H:4 * H])
    c_new = f * c + i * g
    h_new = o * jnp.tanh(c_new)
    pred = h_new @ r["w_fc"].T + r["b_fc"]
    return pred, h_new[None], c_new[None]


if __name__ == "__main__":
    B = 128          # decode streams; fills the MXU row dimension (review: B >= 128)
    V = 16           # input_size (vocab)
    E = 32           # emb_size
    H = 32           # hidden_size
    O = 16           # output_size

    key = jax.random.PRNGKey(0)
    kp, kx, kh, kc = jax.random.split(key, 4)

    params = init_params(kp, V, E, H, O)
    x_tokens = jax.random.randint(kx, (B,), 0, V, dtype=jnp.int32)
    hidden = jax.random.normal(kh, (1, B, H), jnp.float32)
    cell = jax.random.normal(kc, (1, B, H), jnp.float32)

    step = jax.jit(lambda x, h, c: decoder_step(x, h, c, params))
    pred, h_new, c_new = step(x_tokens, hidden, cell)
    jax.block_until_ready((pred, h_new, c_new))

    assert pred.shape == (B, O)
    assert h_new.shape == (1, B, H)
    assert c_new.shape == (1, B, H)

    # Validate against the f32 reference (bf16 weights -> loose tolerance).
    pred_r, h_r, c_r = decoder_step_ref(x_tokens, hidden, cell, params)
    assert jnp.allclose(pred, pred_r, atol=5e-2, rtol=5e-2)
    assert jnp.allclose(h_new, h_r, atol=5e-2, rtol=5e-2)
    assert jnp.allclose(c_new, c_r, atol=5e-2, rtol=5e-2)

    print("KERNEL_OK")
</pallas_src>

<mosaic_0001>
module attributes {stable_mosaic.version = 11 : i64} {
  func.func @decoder_kernel(%arg0: i32, %arg1: memref<128x1xi32, #tpu.memory_space<vmem>>, %arg2: memref<128x128xf32, #tpu.memory_space<vmem>>, %arg3: memref<128x128xf32, #tpu.memory_space<vmem>>, %arg4: memref<128x128xbf16, #tpu.memory_space<vmem>>, %arg5: memref<128x512xbf16, #tpu.memory_space<vmem>>, %arg6: memref<128x512xbf16, #tpu.memory_space<vmem>>, %arg7: memref<1x512xf32, #tpu.memory_space<vmem>>, %arg8: memref<128x128xbf16, #tpu.memory_space<vmem>>, %arg9: memref<1x128xf32, #tpu.memory_space<vmem>>, %arg10: memref<128x128xf32, #tpu.memory_space<vmem>>, %arg11: memref<128x128xf32, #tpu.memory_space<vmem>>, %arg12: memref<128x128xf32, #tpu.memory_space<vmem>>) attributes {dimension_semantics = [#tpu.dimension_semantics<parallel>], iteration_bounds = array<i64: 1>, scalar_prefetch = 0 : i64, scratch_operands = 0 : i64, tpu.core_type = #tpu.core_type<tc>, window_params = [{transform_indices = @transform_0, window_bounds = array<i64: 128, 1>}, {transform_indices = @transform_1, window_bounds = array<i64: 128, 128>}, {transform_indices = @transform_2, window_bounds = array<i64: 128, 128>}, {pipeline_mode = #tpu.pipeline_mode<synchronous>, transform_indices = @transform_3, window_bounds = array<i64: 128, 128>}, {pipeline_mode = #tpu.pipeline_mode<synchronous>, transform_indices = @transform_4, window_bounds = array<i64: 128, 512>}, {pipeline_mode = #tpu.pipeline_mode<synchronous>, transform_indices = @transform_5, window_bounds = array<i64: 128, 512>}, {pipeline_mode = #tpu.pipeline_mode<synchronous>, transform_indices = @transform_6, window_bounds = array<i64: 1, 512>}, {pipeline_mode = #tpu.pipeline_mode<synchronous>, transform_indices = @transform_7, window_bounds = array<i64: 128, 128>}, {pipeline_mode = #tpu.pipeline_mode<synchronous>, transform_indices = @transform_8, window_bounds = array<i64: 1, 128>}, {transform_indices = @transform_9, window_bounds = array<i64: 128, 128>}, {transform_indices = @transform_10, window_bounds = array<i64: 128, 128>}, {transform_indices = @transform_11, window_bounds = array<i64: 128, 128>}]} {
    %c0 = arith.constant 0 : index
    %c0_0 = arith.constant 0 : index
    %0 = vector.load %arg1[%c0, %c0_0] : memref<128x1xi32, #tpu.memory_space<vmem>>, vector<128x1xi32>
    %1 = tpu.iota {dimensions = array<i32: 1>} : vector<128x128xi32>
    %2 = vector.broadcast %0 : vector<128x1xi32> to vector<128x128xi32>
    %3 = arith.cmpi eq, %1, %2 : vector<128x128xi32>
    %4 = arith.extui %3 : vector<128x128xi1> to vector<128x128xi32>
    %5 = arith.sitofp %4 : vector<128x128xi32> to vector<128x128xf32>
    %6 = arith.truncf %5 : vector<128x128xf32> to vector<128x128xbf16>
    %c0_1 = arith.constant 0 : index
    %c0_2 = arith.constant 0 : index
    %7 = vector.load %arg4[%c0_1, %c0_2] : memref<128x128xbf16, #tpu.memory_space<vmem>>, vector<128x128xbf16>
    %cst = arith.constant dense<0.000000e+00> : vector<128x128xf32>
    %8 = tpu.matmul %6, %7, %cst {dimension_numbers = #tpu.dot_dimension_numbers<[1], [0], [0], [1], [0, 0, 1, 1], [], []>} : vector<128x128xbf16>, vector<128x128xbf16>, vector<128x128xf32> -> vector<128x128xf32>
    %9 = arith.truncf %8 : vector<128x128xf32> to vector<128x128xbf16>
    %c0_3 = arith.constant 0 : index
    %c0_4 = arith.constant 0 : index
    %10 = vector.load %arg2[%c0_3, %c0_4] : memref<128x128xf32, #tpu.memory_space<vmem>>, vector<128x128xf32>
    %c0_5 = arith.constant 0 : index
    %c0_6 = arith.constant 0 : index
    %11 = vector.load %arg3[%c0_5, %c0_6] : memref<128x128xf32, #tpu.memory_space<vmem>>, vector<128x128xf32>
    %c0_7 = arith.constant 0 : index
    %c0_8 = arith.constant 0 : index
    %12 = vector.load %arg5[%c0_7, %c0_8] : memref<128x512xbf16, #tpu.memory_space<vmem>>, vector<128x512xbf16>
    %cst_9 = arith.constant dense<0.000000e+00> : vector<128x512xf32>
    %13 = tpu.matmul %9, %12, %cst_9 {dimension_numbers = #tpu.dot_dimension_numbers<[1], [0], [0], [1], [0, 0, 1, 1], [], []>} : vector<128x128xbf16>, vector<128x512xbf16>, vector<128x512xf32> -> vector<128x512xf32>
    %14 = arith.truncf %10 : vector<128x128xf32> to vector<128x128xbf16>
    %c0_10 = arith.constant 0 : index
    %c0_11 = arith.constant 0 : index
    %15 = vector.load %arg6[%c0_10, %c0_11] : memref<128x512xbf16, #tpu.memory_space<vmem>>, vector<128x512xbf16>
    %cst_12 = arith.constant dense<0.000000e+00> : vector<128x512xf32>
    %16 = tpu.matmul %14, %15, %cst_12 {dimension_numbers = #tpu.dot_dimension_numbers<[1], [0], [0], [1], [0, 0, 1, 1], [], []>} : vector<128x128xbf16>, vector<128x512xbf16>, vector<128x512xf32> -> vector<128x512xf32>
    %17 = arith.addf %13, %16 : vector<128x512xf32>
    %c0_13 = arith.constant 0 : index
    %c0_14 = arith.constant 0 : index
    %18 = vector.load %arg7[%c0_13, %c0_14] : memref<1x512xf32, #tpu.memory_space<vmem>>, vector<1x512xf32>
    %19 = vector.broadcast %18 : vector<1x512xf32> to vector<128x512xf32>
    %20 = arith.addf %17, %19 : vector<128x512xf32>
    %21 = vector.extract_strided_slice %20 {offsets = [0, 0], sizes = [128, 128], strides = [1, 1]} : vector<128x512xf32> to vector<128x128xf32>
    %22 = arith.negf %21 : vector<128x128xf32>
    %23 = math.exp %22 : vector<128x128xf32>
    %cst_15 = arith.constant 1.000000e+00 : f32
    %24 = vector.broadcast %cst_15 : f32 to vector<128x128xf32>
    %25 = arith.addf %24, %23 : vector<128x128xf32>
    %26 = arith.divf %24, %25 : vector<128x128xf32>
    %27 = vector.extract_strided_slice %20 {offsets = [0, 128], sizes = [128, 128], strides = [1, 1]} : vector<128x512xf32> to vector<128x128xf32>
    %28 = arith.negf %27 : vector<128x128xf32>
    %29 = math.exp %28 : vector<128x128xf32>
    %cst_16 = arith.constant 1.000000e+00 : f32
    %30 = vector.broadcast %cst_16 : f32 to vector<128x128xf32>
    %31 = arith.addf %30, %29 : vector<128x128xf32>
    %32 = arith.divf %30, %31 : vector<128x128xf32>
    %33 = vector.extract_strided_slice %20 {offsets = [0, 256], sizes = [128, 128], strides = [1, 1]} : vector<128x512xf32> to vector<128x128xf32>
    %34 = math.tanh %33 : vector<128x128xf32>
    %35 = vector.extract_strided_slice %20 {offsets = [0, 384], sizes = [128, 128], strides = [1, 1]} : vector<128x512xf32> to vector<128x128xf32>
    %36 = arith.negf %35 : vector<128x128xf32>
    %37 = math.exp %36 : vector<128x128xf32>
    %cst_17 = arith.constant 1.000000e+00 : f32
    %38 = vector.broadcast %cst_17 : f32 to vector<128x128xf32>
    %39 = arith.addf %38, %37 : vector<128x128xf32>
    %40 = arith.divf %38, %39 : vector<128x128xf32>
    %41 = arith.mulf %32, %11 : vector<128x128xf32>
    %42 = arith.mulf %26, %34 : vector<128x128xf32>
    %43 = arith.addf %41, %42 : vector<128x128xf32>
    %44 = math.tanh %43 : vector<128x128xf32>
    %45 = arith.mulf %40, %44 : vector<128x128xf32>
    %46 = tpu.iota {dimensions = array<i32: 1>} : vector<128x128xi32>
    %c32_i32 = arith.constant 32 : i32
    %47 = vector.broadcast %c32_i32 : i32 to vector<128x128xi32>
    %48 = arith.cmpi slt, %46, %47 : vector<128x128xi32>
    %cst_18 = arith.constant 0.000000e+00 : f32
    %49 = vector.broadcast %cst_18 : f32 to vector<128x128xf32>
    %50 = arith.select %48, %43, %49 : vector<128x128xi1>, vector<128x128xf32>
    %cst_19 = arith.constant 0.000000e+00 : f32
    %51 = vector.broadcast %cst_19 : f32 to vector<128x128xf32>
    %52 = arith.select %48, %45, %51 : vector<128x128xi1>, vector<128x128xf32>
    %53 = arith.truncf %52 : vector<128x128xf32> to vector<128x128xbf16>
    %c0_20 = arith.constant 0 : index
    %c0_21 = arith.constant 0 : index
    %54 = vector.load %arg8[%c0_20, %c0_21] : memref<128x128xbf16, #tpu.memory_space<vmem>>, vector<128x128xbf16>
    %cst_22 = arith.constant dense<0.000000e+00> : vector<128x128xf32>
    %55 = tpu.matmul %53, %54, %cst_22 {dimension_numbers = #tpu.dot_dimension_numbers<[1], [0], [0], [1], [0, 0, 1, 1], [], []>} : vector<128x128xbf16>, vector<128x128xbf16>, vector<128x128xf32> -> vector<128x128xf32>
    %c0_23 = arith.constant 0 : index
    %c0_24 = arith.constant 0 : index
    %56 = vector.load %arg9[%c0_23, %c0_24] : memref<1x128xf32, #tpu.memory_space<vmem>>, vector<1x128xf32>
    %57 = vector.broadcast %56 : vector<1x128xf32> to vector<128x128xf32>
    %58 = arith.addf %55, %57 : vector<128x128xf32>
    %c0_25 = arith.constant 0 : index
    %c0_26 = arith.constant 0 : index
    %59 = vector.load %arg10[%c0_25, %c0_26] : memref<128x128xf32, #tpu.memory_space<vmem>>, vector<128x128xf32>
    tpu.vector_store %arg10[%c0_25, %c0_26], %58 {strides = array<i32>} : memref<128x128xf32, #tpu.memory_space<vmem>>, vector<128x128xf32>,
    %c0_27 = arith.constant 0 : index
    %c0_28 = arith.constant 0 : index
    %60 = vector.load %arg11[%c0_27, %c0_28] : memref<128x128xf32, #tpu.memory_space<vmem>>, vector<128x128xf32>
    tpu.vector_store %arg11[%c0_27, %c0_28], %52 {strides = array<i32>} : memref<128x128xf32, #tpu.memory_space<vmem>>, vector<128x128xf32>,
    %c0_29 = arith.constant 0 : index
    %c0_30 = arith.constant 0 : index
    %61 = vector.load %arg12[%c0_29, %c0_30] : memref<128x128xf32, #tpu.memory_space<vmem>>, vector<128x128xf32>
    tpu.vector_store %arg12[%c0_29, %c0_30], %50 {strides = array<i32>} : memref<128x128xf32, #tpu.memory_space<vmem>>, vector<128x128xf32>,
    return
  }
  func.func @transform_0(%arg0: i32) -> (i32, i32) {
    %c0_i32 = arith.constant 0 : i32
    %c0_i32_0 = arith.constant 0 : i32
    return %arg0, %c0_i32 : i32, i32
  }
  func.func @transform_1(%arg0: i32) -> (i32, i32) {
    %c0_i32 = arith.constant 0 : i32
    %c0_i32_0 = arith.constant 0 : i32
    return %arg0, %c0_i32 : i32, i32
  }
  func.func @transform_2(%arg0: i32) -> (i32, i32) {
    %c0_i32 = arith.constant 0 : i32
    %c0_i32_0 = arith.constant 0 : i32
    return %arg0, %c0_i32 : i32, i32
  }
  func.func @transform_3(%arg0: i32) -> (i32, i32) {
    %c0_i32 = arith.constant 0 : i32
    %c0_i32_0 = arith.constant 0 : i32
    %c0_i32_1 = arith.constant 0 : i32
    return %c0_i32, %c0_i32_0 : i32, i32
  }
  func.func @transform_4(%arg0: i32) -> (i32, i32) {
    %c0_i32 = arith.constant 0 : i32
    %c0_i32_0 = arith.constant 0 : i32
    %c0_i32_1 = arith.constant 0 : i32
    return %c0_i32, %c0_i32_0 : i32, i32
  }
  func.func @transform_5(%arg0: i32) -> (i32, i32) {
    %c0_i32 = arith.constant 0 : i32
    %c0_i32_0 = arith.constant 0 : i32
    %c0_i32_1 = arith.constant 0 : i32
    return %c0_i32, %c0_i32_0 : i32, i32
  }
  func.func @transform_6(%arg0: i32) -> (i32, i32) {
    %c0_i32 = arith.constant 0 : i32
    %c0_i32_0 = arith.constant 0 : i32
    %c0_i32_1 = arith.constant 0 : i32
    return %c0_i32, %c0_i32_0 : i32, i32
  }
  func.func @transform_7(%arg0: i32) -> (i32, i32) {
    %c0_i32 = arith.constant 0 : i32
    %c0_i32_0 = arith.constant 0 : i32
    %c0_i32_1 = arith.constant 0 : i32
    return %c0_i32, %c0_i32_0 : i32, i32
  }
  func.func @transform_8(%arg0: i32) -> (i32, i32) {
    %c0_i32 = arith.constant 0 : i32
    %c0_i32_0 = arith.constant 0 : i32
    %c0_i32_1 = arith.constant 0 : i32
    return %c0_i32, %c0_i32_0 : i32, i32
  }
  func.func @transform_9(%arg0: i32) -> (i32, i32) {
    %c0_i32 = arith.constant 0 : i32
    %c0_i32_0 = arith.constant 0 : i32
    return %arg0, %c0_i32 : i32, i32
  }
  func.func @transform_10(%arg0: i32) -> (i32, i32) {
    %c0_i32 = arith.constant 0 : i32
    %c0_i32_0 = arith.constant 0 : i32
    return %arg0, %c0_i32 : i32, i32
  }
  func.func @transform_11(%arg0: i32) -> (i32, i32) {
    %c0_i32 = arith.constant 0 : i32
    %c0_i32_0 = arith.constant 0 : i32
    return %arg0, %c0_i32 : i32, i32
  }
}

</mosaic_0001>

<llo_original>
// kernel: _lambda_.1
$region0: #{_lambda_.1}
  #allocation0 [shape = 'u32[]', space=smem, size = 0x4, offset = 0x4, fixed_abs, tag = 'smem constant byte address 0x4 - core index']
  #allocation1 [shape = 'u32[72,128]{1,0:T(1,128)}', space=vmem, size = 0x9000, scoped, tag = 'internal scratch']
  %s0 = inlined_call_operand.vmem [shape: s32[128,1], index: 0, kind: input, shape index: {}]
  %s1 = inlined_call_operand.vmem [shape: f32[128,128], index: 1, kind: input, shape index: {}, may-alias: {1,10}]
  %s2 = inlined_call_operand.vmem [shape: f32[128,128], index: 2, kind: input, shape index: {}, may-alias: {2,11}]
  %s3 = inlined_call_operand.vmem [shape: bf16[128,128], index: 3, kind: input, shape index: {}]
  %s4 = inlined_call_operand.vmem [shape: bf16[128,512], index: 4, kind: input, shape index: {}]
  %s5 = inlined_call_operand.vmem [shape: bf16[128,512], index: 5, kind: input, shape index: {}]
  %s6 = inlined_call_operand.vmem [shape: f32[1,512], index: 6, kind: input, shape index: {}]
  %s7 = inlined_call_operand.vmem [shape: bf16[128,128], index: 7, kind: input, shape index: {}]
  %s8 = inlined_call_operand.vmem [shape: f32[1,128], index: 8, kind: input, shape index: {}]
  %s9 = inlined_call_operand.vmem [shape: f32[128,128], index: 9, kind: output, shape index: {0}]
  %s10 = inlined_call_operand.vmem [shape: f32[128,128], index: 10, kind: output, shape index: {1}, may-alias: {1,10}]
  %s11 = inlined_call_operand.vmem [shape: f32[128,128], index: 11, kind: output, shape index: {2}, may-alias: {2,11}]
  %12 = xla_tuple %s9, %s10, %s11
  %s13 = sld [smem:[#allocation0]]
  $region62: #{_lambda_.1} parent=0
    _
  %s15 = ssub.s32 1, %s13
  %s16 = scalar_select 0, %s15, %s13
  // Predicated region
  $region2: #{_lambda_.1} parent=0 // pred_check
    _
  $region3: #{_lambda_.1} parent=0 // pred_check_branch
    %18 = sbr.rel (0) target = $region5
  $region4: #{_lambda_.1} parent=0 // pred_region
    _
  $region5: #{_lambda_.1} parent=0 // pred_fallthru
    _
  // Predicated region
  $region6: #{_lambda_.1} parent=0 // pred_check
    _
  $region7: #{_lambda_.1} parent=0 // pred_check_branch
    %20 = sbr.rel (0) target = $region9
  $region8: #{_lambda_.1} parent=0 // pred_region
    _
  $region9: #{_lambda_.1} parent=0 // pred_fallthru
    _
  // Predicated region
  $region10: #{_lambda_.1} parent=0 // pred_check
    _
  $region11: #{_lambda_.1} parent=0 // pred_check_branch
    %22 = sbr.rel (0) target = $region13
  $region12: #{_lambda_.1} parent=0 // pred_region
    _
  $region13: #{_lambda_.1} parent=0 // pred_fallthru
    _
  // Predicated region
  $region14: #{_lambda_.1} parent=0 // pred_check
    _
  $region15: #{_lambda_.1} parent=0 // pred_check_branch
    %24 = sbr.rel (0) target = $region17
  $region16: #{_lambda_.1} parent=0 // pred_region
    _
  $region17: #{_lambda_.1} parent=0 // pred_fallthru
    _
  // Predicated region
  $region18: #{_lambda_.1} parent=0 // pred_check
    _
  $region19: #{_lambda_.1} parent=0 // pred_check_branch
    %26 = sbr.rel (0) target = $region21
  $region20: #{_lambda_.1} parent=0 // pred_region
    _
  $region21: #{_lambda_.1} parent=0 // pred_fallthru
    _
  // Predicated region
  $region22: #{_lambda_.1} parent=0 // pred_check
    _
  $region23: #{_lambda_.1} parent=0 // pred_check_branch
    %28 = sbr.rel (0) target = $region25
  $region24: #{_lambda_.1} parent=0 // pred_region
    _
  $region25: #{_lambda_.1} parent=0 // pred_fallthru
    _
  // Predicated region
  $region26: #{_lambda_.1} parent=0 // pred_check
    _
  $region27: #{_lambda_.1} parent=0 // pred_check_branch
    %30 = sbr.rel (0) target = $region29
  $region28: #{_lambda_.1} parent=0 // pred_region
    _
  $region29: #{_lambda_.1} parent=0 // pred_fallthru
    _
  // Predicated region
  $region30: #{_lambda_.1} parent=0 // pred_check
    _
  $region31: #{_lambda_.1} parent=0 // pred_check_branch
    %32 = sbr.rel (0) target = $region33
  $region32: #{_lambda_.1} parent=0 // pred_region
    _
  $region33: #{_lambda_.1} parent=0 // pred_fallthru
    _
  // Predicated region
  $region34: #{_lambda_.1} parent=0 // pred_check
    _
  $region35: #{_lambda_.1} parent=0 // pred_check_branch
    %34 = sbr.rel (0) target = $region37
  $region36: #{_lambda_.1} parent=0 // pred_region
    _
  $region37: #{_lambda_.1} parent=0 // pred_fallthru
    _
  %v35 = vld [vmem:[%s0] sm:$0xff]
  %v36 = vld [vmem:[%s0 + $0x8] sm:$0xff]
  %v37 = vld [vmem:[%s0 + $0x10] sm:$0xff]
  %v38 = vld [vmem:[%s0 + $0x18] sm:$0xff]
  %v39 = vld [vmem:[%s0 + $0x20] sm:$0xff]
  %v40 = vld [vmem:[%s0 + $0x28] sm:$0xff]
  %v41 = vld [vmem:[%s0 + $0x30] sm:$0xff]
  %v42 = vld [vmem:[%s0 + $0x38] sm:$0xff]
  %v43 = vld [vmem:[%s0 + $0x40] sm:$0xff]
  %v44 = vld [vmem:[%s0 + $0x48] sm:$0xff]
  %v45 = vld [vmem:[%s0 + $0x50] sm:$0xff]
  %v46 = vld [vmem:[%s0 + $0x58] sm:$0xff]
  %v47 = vld [vmem:[%s0 + $0x60] sm:$0xff]
  %v48 = vld [vmem:[%s0 + $0x68] sm:$0xff]
  %v49 = vld [vmem:[%s0 + $0x70] sm:$0xff]
  %v50 = vld [vmem:[%s0 + $0x78] sm:$0xff]
  %v51 = vlaneseq
  %v52 = vand.u32 %v51, 127
  %53 = vset.pattern.permute.xlu0 0
  %54 = vperm.xlu0 %53, %v35
  %v55 = vpop.permute.xlu0 %54
  %56 = vset.pattern.permute.xlu0 0
  %57 = vperm.xlu0 %56, %v36
  %v58 = vpop.permute.xlu0 %57
  %59 = vset.pattern.permute.xlu0 0
  %60 = vperm.xlu0 %59, %v37
  %v61 = vpop.permute.xlu0 %60
  %62 = vset.pattern.permute.xlu0 0
  %63 = vperm.xlu0 %62, %v38
  %v64 = vpop.permute.xlu0 %63
  %65 = vset.pattern.permute.xlu0 0
  %66 = vperm.xlu0 %65, %v39
  %v67 = vpop.permute.xlu0 %66
  %68 = vset.pattern.permute.xlu0 0
  %69 = vperm.xlu0 %68, %v40
  %v70 = vpop.permute.xlu0 %69
  %71 = vset.pattern.permute.xlu0 0
  %72 = vperm.xlu0 %71, %v41
  %v73 = vpop.permute.xlu0 %72
  %74 = vset.pattern.permute.xlu0 0
  %75 = vperm.xlu0 %74, %v42
  %v76 = vpop.permute.xlu0 %75
  %77 = vset.pattern.permute.xlu0 0
  %78 = vperm.xlu0 %77, %v43
  %v79 = vpop.permute.xlu0 %78
  %80 = vset.pattern.permute.xlu0 0
  %81 = vperm.xlu0 %80, %v44
  %v82 = vpop.permute.xlu0 %81
  %83 = vset.pattern.permute.xlu0 0
  %84 = vperm.xlu0 %83, %v45
  %v85 = vpop.permute.xlu0 %84
  %86 = vset.pattern.permute.xlu0 0
  %87 = vperm.xlu0 %86, %v46
  %v88 = vpop.permute.xlu0 %87
  %89 = vset.pattern.permute.xlu0 0
  %90 = vperm.xlu0 %89, %v47
  %v91 = vpop.permute.xlu0 %90
  %92 = vset.pattern.permute.xlu0 0
  %93 = vperm.xlu0 %92, %v48
  %v94 = vpop.permute.xlu0 %93
  %95 = vset.pattern.permute.xlu0 0
  %96 = vperm.xlu0 %95, %v49
  %v97 = vpop.permute.xlu0 %96
  %98 = vset.pattern.permute.xlu0 0
  %99 = vperm.xlu0 %98, %v50
  %v100 = vpop.permute.xlu0 %99
  %vm101 = vcmp.eq.s32.totalorder %v52, %v55
  %vm102 = vcmp.eq.s32.totalorder %v52, %v58
  %vm103 = vcmp.eq.s32.totalorder %v52, %v61
  %vm104 = vcmp.eq.s32.totalorder %v52, %v64
  %vm105 = vcmp.eq.s32.totalorder %v52, %v67
  %vm106 = vcmp.eq.s32.totalorder %v52, %v70
  %vm107 = vcmp.eq.s32.totalorder %v52, %v73
  %vm108 = vcmp.eq.s32.totalorder %v52, %v76
  %vm109 = vcmp.eq.s32.totalorder %v52, %v79
  %vm110 = vcmp.eq.s32.totalorder %v52, %v82
  %vm111 = vcmp.eq.s32.totalorder %v52, %v85
  %vm112 = vcmp.eq.s32.totalorder %v52, %v88
  %vm113 = vcmp.eq.s32.totalorder %v52, %v91
  %vm114 = vcmp.eq.s32.totalorder %v52, %v94
  %vm115 = vcmp.eq.s32.totalorder %v52, %v97
  %vm116 = vcmp.eq.s32.totalorder %v52, %v100
  %v117 = vsel %vm101, 1, 0
  %v118 = vsel %vm102, 1, 0
  %v119 = vsel %vm103, 1, 0
  %v120 = vsel %vm104, 1, 0
  %v121 = vsel %vm105, 1, 0
  %v122 = vsel %vm106, 1, 0
  %v123 = vsel %vm107, 1, 0
  %v124 = vsel %vm108, 1, 0
  %v125 = vsel %vm109, 1, 0
  %v126 = vsel %vm110, 1, 0
  %v127 = vsel %vm111, 1, 0
  %v128 = vsel %vm112, 1, 0
  %v129 = vsel %vm113, 1, 0
  %v130 = vsel %vm114, 1, 0
  %v131 = vsel %vm115, 1, 0
  %v132 = vsel %vm116, 1, 0
  %v133 = vcvt.s32.f32 %v117
  %v134 = vcvt.s32.f32 %v118
  %v135 = vcvt.s32.f32 %v119
  %v136 = vcvt.s32.f32 %v120
  %v137 = vcvt.s32.f32 %v121
  %v138 = vcvt.s32.f32 %v122
  %v139 = vcvt.s32.f32 %v123
  %v140 = vcvt.s32.f32 %v124
  %v141 = vcvt.s32.f32 %v125
  %v142 = vcvt.s32.f32 %v126
  %v143 = vcvt.s32.f32 %v127
  %v144 = vcvt.s32.f32 %v128
  %v145 = vcvt.s32.f32 %v129
  %v146 = vcvt.s32.f32 %v130
  %v147 = vcvt.s32.f32 %v131
  %v148 = vcvt.s32.f32 %v132
  %v149 = vpack.c.bf16 %v134, %v133
  %v150 = vpack.c.bf16 %v136, %v135
  %v151 = vpack.c.bf16 %v138, %v137
  %v152 = vpack.c.bf16 %v140, %v139
  %v153 = vpack.c.bf16 %v142, %v141
  %v154 = vpack.c.bf16 %v144, %v143
  %v155 = vpack.c.bf16 %v146, %v145
  %v156 = vpack.c.bf16 %v148, %v147
  %v157 = vld [vmem:[%s3] sm:$0xf]
  %v158 = vld [vmem:[%s3 + $0x4] sm:$0xf]
  %v159 = vld [vmem:[%s3 + $0x8] sm:$0xf]
  %v160 = vld [vmem:[%s3 + $0xc] sm:$0xf]
  %v161 = vld [vmem:[%s3 + $0x10] sm:$0xf]
  %v162 = vld [vmem:[%s3 + $0x14] sm:$0xf]
  %v163 = vld [vmem:[%s3 + $0x18] sm:$0xf]
  %v164 = vld [vmem:[%s3 + $0x1c] sm:$0xf]
  %v165 = vld [vmem:[%s3 + $0x20] sm:$0xf]
  %v166 = vld [vmem:[%s3 + $0x24] sm:$0xf]
  %v167 = vld [vmem:[%s3 + $0x28] sm:$0xf]
  %v168 = vld [vmem:[%s3 + $0x2c] sm:$0xf]
  %v169 = vld [vmem:[%s3 + $0x30] sm:$0xf]
  %v170 = vld [vmem:[%s3 + $0x34] sm:$0xf]
  %v171 = vld [vmem:[%s3 + $0x38] sm:$0xf]
  %v172 = vld [vmem:[%s3 + $0x3c] sm:$0xf]
  %v189 = vunpack.c.l.b16 %v157
  %v190 = vunpack.c.l.b16 %v158
  %v191 = vunpack.c.l.b16 %v159
  %v192 = vunpack.c.l.b16 %v160
  %v193 = vunpack.c.l.b16 %v161
  %v194 = vunpack.c.l.b16 %v162
  %v195 = vunpack.c.l.b16 %v163
  %v196 = vunpack.c.l.b16 %v164
  %v197 = vunpack.c.l.b16 %v165
  %v198 = vunpack.c.l.b16 %v166
  %v199 = vunpack.c.l.b16 %v167
  %v200 = vunpack.c.l.b16 %v168
  %v201 = vunpack.c.l.b16 %v169
  %v202 = vunpack.c.l.b16 %v170
  %v203 = vunpack.c.l.b16 %v171
  %v204 = vunpack.c.l.b16 %v172
  %v205 = vpack.c.b16 %v190, %v189
  %v206 = vpack.c.b16 %v192, %v191
  %v207 = vpack.c.b16 %v194, %v193
  %v208 = vpack.c.b16 %v196, %v195
  %v209 = vpack.c.b16 %v198, %v197
  %v210 = vpack.c.b16 %v200, %v199
  %v211 = vpack.c.b16 %v202, %v201
  %v212 = vpack.c.b16 %v204, %v203
  %221 = vmatpush.bf16.msra.mxu0 %v212
  %222 = vmatpush.bf16.msra.mxu0 %v211
  %223 = vmatpush.bf16.msra.mxu0 %v210
  %224 = vmatpush.bf16.msra.mxu0 %v209
  %225 = vmatpush.bf16.msra.mxu0 %v208
  %226 = vmatpush.bf16.msra.mxu0 %v207
  %227 = vmatpush.bf16.msra.mxu0 %v206
  %228 = vmatpush.bf16.msra.mxu0 %v205
  %229 = vmatmul.bf16.gmra.mxu0 %v149
  %v230 = vpop.f32.mrf.mxu0
  %v231 = vadd.f32 0.0, %v230
  %v232 = vpop.f32.mrf.mxu0
  %v233 = vadd.f32 0.0, %v232
  %234 = vmatmul.bf16.gmra.mxu0 %v150
  %v235 = vpop.f32.mrf.mxu0
  %v236 = vadd.f32 0.0, %v235
  %v237 = vpop.f32.mrf.mxu0
  %v238 = vadd.f32 0.0, %v237
  %239 = vmatmul.bf16.gmra.mxu0 %v151
  %v240 = vpop.f32.mrf.mxu0
  %v241 = vadd.f32 0.0, %v240
  %v242 = vpop.f32.mrf.mxu0
  %v243 = vadd.f32 0.0, %v242
  %244 = vmatmul.bf16.gmra.mxu0 %v152
  %v245 = vpop.f32.mrf.mxu0
  %v246 = vadd.f32 0.0, %v245
  %v247 = vpop.f32.mrf.mxu0
  %v248 = vadd.f32 0.0, %v247
  %249 = vmatmul.bf16.gmra.mxu0 %v153
  %v250 = vpop.f32.mrf.mxu0
  %v251 = vadd.f32 0.0, %v250
  %v252 = vpop.f32.mrf.mxu0
  %v253 = vadd.f32 0.0, %v252
  %254 = vmatmul.bf16.gmra.mxu0 %v154
  %v255 = vpop.f32.mrf.mxu0
  %v256 = vadd.f32 0.0, %v255
  %v257 = vpop.f32.mrf.mxu0
  %v258 = vadd.f32 0.0, %v257
  %259 = vmatmul.bf16.gmra.mxu0 %v155
  %v260 = vpop.f32.mrf.mxu0
  %v261 = vadd.f32 0.0, %v260
  %v262 = vpop.f32.mrf.mxu0
  %v263 = vadd.f32 0.0, %v262
  %264 = vmatmul.bf16.gmra.mxu0 %v156
  %v265 = vpop.f32.mrf.mxu0
  %v266 = vadd.f32 0.0, %v265
  %v267 = vpop.f32.mrf.mxu0
  %v268 = vadd.f32 0.0, %v267
  %269 = vdwg.mxu0
  %v270 = vpack.c.bf16 %v233, %v231
  %v271 = vpack.c.bf16 %v238, %v236
  %v272 = vpack.c.bf16 %v243, %v241
  %v273 = vpack.c.bf16 %v248, %v246
  %v274 = vpack.c.bf16 %v253, %v251
  %v275 = vpack.c.bf16 %v258, %v256
  %v276 = vpack.c.bf16 %v263, %v261
  %v277 = vpack.c.bf16 %v268, %v266
  %v278 = vld [vmem:[%s1] sm:$0xff]
  %v279 = vld [vmem:[%s1 + $0x8] sm:$0xff]
  %v280 = vld [vmem:[%s1 + $0x10] sm:$0xff]
  %v281 = vld [vmem:[%s1 + $0x18] sm:$0xff]
  %v282 = vld [vmem:[%s1 + $0x20] sm:$0xff]
  %v283 = vld [vmem:[%s1 + $0x28] sm:$0xff]
  %v284 = vld [vmem:[%s1 + $0x30] sm:$0xff]
  %v285 = vld [vmem:[%s1 + $0x38] sm:$0xff]
  %v286 = vld [vmem:[%s1 + $0x40] sm:$0xff]
  %v287 = vld [vmem:[%s1 + $0x48] sm:$0xff]
  %v288 = vld [vmem:[%s1 + $0x50] sm:$0xff]
  %v289 = vld [vmem:[%s1 + $0x58] sm:$0xff]
  %v290 = vld [vmem:[%s1 + $0x60] sm:$0xff]
  %v291 = vld [vmem:[%s1 + $0x68] sm:$0xff]
  %v292 = vld [vmem:[%s1 + $0x70] sm:$0xff]
  %v293 = vld [vmem:[%s1 + $0x78] sm:$0xff]
  %v294 = vld [vmem:[%s2] sm:$0xff]
  %v295 = vld [vmem:[%s2 + $0x8] sm:$0xff]
  %v296 = vld [vmem:[%s2 + $0x10] sm:$0xff]
  %v297 = vld [vmem:[%s2 + $0x18] sm:$0xff]
  %v298 = vld [vmem:[%s2 + $0x20] sm:$0xff]
  %v299 = vld [vmem:[%s2 + $0x28] sm:$0xff]
  %v300 = vld [vmem:[%s2 + $0x30] sm:$0xff]
  %v301 = vld [vmem:[%s2 + $0x38] sm:$0xff]
  %v302 = vld [vmem:[%s2 + $0x40] sm:$0xff]
  %v303 = vld [vmem:[%s2 + $0x48] sm:$0xff]
  %v304 = vld [vmem:[%s2 + $0x50] sm:$0xff]
  %v305 = vld [vmem:[%s2 + $0x58] sm:$0xff]
  %v306 = vld [vmem:[%s2 + $0x60] sm:$0xff]
  %v307 = vld [vmem:[%s2 + $0x68] sm:$0xff]
  %v308 = vld [vmem:[%s2 + $0x70] sm:$0xff]
  %v309 = vld [vmem:[%s2 + $0x78] sm:$0xff]
  %v310 = vld [vmem:[%s4] sm:$0xff]
  %v311 = vld [vmem:[%s4 + $0x8] sm:$0xff]
  %v312 = vld [vmem:[%s4 + $0x10] sm:$0xff]
  %v313 = vld [vmem:[%s4 + $0x18] sm:$0xff]
  %v314 = vld [vmem:[%s4 + $0x20] sm:$0xff]
  %v315 = vld [vmem:[%s4 + $0x28] sm:$0xff]
  %v316 = vld [vmem:[%s4 + $0x30] sm:$0xff]
  %v317 = vld [vmem:[%s4 + $0x38] sm:$0xff]
  %v318 = vld [vmem:[%s4 + $0x40] sm:$0xff]
  %v319 = vld [vmem:[%s4 + $0x48] sm:$0xff]
  %v320 = vld [vmem:[%s4 + $0x50] sm:$0xff]
  %v321 = vld [vmem:[%s4 + $0x58] sm:$0xff]
  %v322 = vld [vmem:[%s4 + $0x60] sm:$0xff]
  %v323 = vld [vmem:[%s4 + $0x68] sm:$0xff]
  %v324 = vld [vmem:[%s4 + $0x70] sm:$0xff]
  %v325 = vld [vmem:[%s4 + $0x78] sm:$0xff]
  %v326 = vld [vmem:[%s4 + $0x80] sm:$0xff]
  %v327 = vld [vmem:[%s4 + $0x88] sm:$0xff]
  %v328 = vld [vmem:[%s4 + $0x90] sm:$0xff]
  %v329 = vld [vmem:[%s4 + $0x98] sm:$0xff]
  %v330 = vld [vmem:[%s4 + $0xa0] sm:$0xff]
  %v331 = vld [vmem:[%s4 + $0xa8] sm:$0xff]
  %v332 = vld [vmem:[%s4 + $0xb0] sm:$0xff]
  %v333 = vld [vmem:[%s4 + $0xb8] sm:$0xff]
  %v334 = vld [vmem:[%s4 + $0xc0] sm:$0xff]
  %v335 = vld [vmem:[%s4 + $0xc8] sm:$0xff]
  %v336 = vld [vmem:[%s4 + $0xd0] sm:$0xff]
  %v337 = vld [vmem:[%s4 + $0xd8] sm:$0xff]
  %v338 = vld [vmem:[%s4 + $0xe0] sm:$0xff]
  %v339 = vld [vmem:[%s4 + $0xe8] sm:$0xff]
  %v340 = vld [vmem:[%s4 + $0xf0] sm:$0xff]
  %v341 = vld [vmem:[%s4 + $0xf8] sm:$0xff]
  %v342 = vpack.c.bf16 %v279, %v278
  %v343 = vpack.c.bf16 %v281, %v280
  %v344 = vpack.c.bf16 %v283, %v282
  %v345 = vpack.c.bf16 %v285, %v284
  %v346 = vpack.c.bf16 %v287, %v286
  %v347 = vpack.c.bf16 %v289, %v288
  %v348 = vpack.c.bf16 %v291, %v290
  %v349 = vpack.c.bf16 %v293, %v292
  %v350 = vld [vmem:[%s5] sm:$0xff]
  %v351 = vld [vmem:[%s5 + $0x8] sm:$0xff]
  %v352 = vld [vmem:[%s5 + $0x10] sm:$0xff]
  %v353 = vld [vmem:[%s5 + $0x18] sm:$0xff]
  %v354 = vld [vmem:[%s5 + $0x20] sm:$0xff]
  %v355 = vld [vmem:[%s5 + $0x28] sm:$0xff]
  %v356 = vld [vmem:[%s5 + $0x30] sm:$0xff]
  %v357 = vld [vmem:[%s5 + $0x38] sm:$0xff]
  %v358 = vld [vmem:[%s5 + $0x40] sm:$0xff]
  %v359 = vld [vmem:[%s5 + $0x48] sm:$0xff]
  %v360 = vld [vmem:[%s5 + $0x50] sm:$0xff]
  %v361 = vld [vmem:[%s5 + $0x58] sm:$0xff]
  %v362 = vld [vmem:[%s5 + $0x60] sm:$0xff]
  %v363 = vld [vmem:[%s5 + $0x68] sm:$0xff]
  %v364 = vld [vmem:[%s5 + $0x70] sm:$0xff]
  %v365 = vld [vmem:[%s5 + $0x78] sm:$0xff]
  %v366 = vld [vmem:[%s5 + $0x80] sm:$0xff]
  %v367 = vld [vmem:[%s5 + $0x88] sm:$0xff]
  %v368 = vld [vmem:[%s5 + $0x90] sm:$0xff]
  %v369 = vld [vmem:[%s5 + $0x98] sm:$0xff]
  %v370 = vld [vmem:[%s5 + $0xa0] sm:$0xff]
  %v371 = vld [vmem:[%s5 + $0xa8] sm:$0xff]
  %v372 = vld [vmem:[%s5 + $0xb0] sm:$0xff]
  %v373 = vld [vmem:[%s5 + $0xb8] sm:$0xff]
  %v374 = vld [vmem:[%s5 + $0xc0] sm:$0xff]
  %v375 = vld [vmem:[%s5 + $0xc8] sm:$0xff]
  %v376 = vld [vmem:[%s5 + $0xd0] sm:$0xff]
  %v377 = vld [vmem:[%s5 + $0xd8] sm:$0xff]
  %v378 = vld [vmem:[%s5 + $0xe0] sm:$0xff]
  %v379 = vld [vmem:[%s5 + $0xe8] sm:$0xff]
  %v380 = vld [vmem:[%s5 + $0xf0] sm:$0xff]
  %v381 = vld [vmem:[%s5 + $0xf8] sm:$0xff]
  %v414 = vunpack.c.l.b16 %v350
  %v415 = vunpack.c.h.b16 %v350
  %v416 = vunpack.c.l.b16 %v351
  %v417 = vunpack.c.h.b16 %v351
  %v418 = vunpack.c.l.b16 %v352
  %v419 = vunpack.c.h.b16 %v352
  %v420 = vunpack.c.l.b16 %v353
  %v421 = vunpack.c.h.b16 %v353
  %v422 = vunpack.c.l.b16 %v354
  %v423 = vunpack.c.h.b16 %v354
  %v424 = vunpack.c.l.b16 %v355
  %v425 = vunpack.c.h.b16 %v355
  %v426 = vunpack.c.l.b16 %v356
  %v427 = vunpack.c.h.b16 %v356
  %v428 = vunpack.c.l.b16 %v357
  %v429 = vunpack.c.h.b16 %v357
  %v430 = vunpack.c.l.b16 %v358
  %v431 = vunpack.c.h.b16 %v358
  %v432 = vunpack.c.l.b16 %v359
  %v433 = vunpack.c.h.b16 %v359
  %v434 = vunpack.c.l.b16 %v360
  %v435 = vunpack.c.h.b16 %v360
  %v436 = vunpack.c.l.b16 %v361
  %v437 = vunpack.c.h.b16 %v361
  %v438 = vunpack.c.l.b16 %v362
  %v439 = vunpack.c.h.b16 %v362
  %v440 = vunpack.c.l.b16 %v363
  %v441 = vunpack.c.h.b16 %v363
  %v442 = vunpack.c.l.b16 %v364
  %v443 = vunpack.c.h.b16 %v364
  %v444 = vunpack.c.l.b16 %v365
  %v445 = vunpack.c.h.b16 %v365
  %v446 = vunpack.c.l.b16 %v366
  %v447 = vunpack.c.h.b16 %v366
  %v448 = vunpack.c.l.b16 %v367
  %v449 = vunpack.c.h.b16 %v367
  %v450 = vunpack.c.l.b16 %v368
  %v451 = vunpack.c.h.b16 %v368
  %v452 = vunpack.c.l.b16 %v369
  %v453 = vunpack.c.h.b16 %v369
  %v454 = vunpack.c.l.b16 %v370
  %v455 = vunpack.c.h.b16 %v370
  %v456 = vunpack.c.l.b16 %v371
  %v457 = vunpack.c.h.b16 %v371
  %v458 = vunpack.c.l.b16 %v372
  %v459 = vunpack.c.h.b16 %v372
  %v460 = vunpack.c.l.b16 %v373
  %v461 = vunpack.c.h.b16 %v373
  %v462 = vunpack.c.l.b16 %v374
  %v463 = vunpack.c.h.b16 %v374
  %v464 = vunpack.c.l.b16 %v375
  %v465 = vunpack.c.h.b16 %v375
  %v466 = vunpack.c.l.b16 %v376
  %v467 = vunpack.c.h.b16 %v376
  %v468 = vunpack.c.l.b16 %v377
  %v469 = vunpack.c.h.b16 %v377
  %v470 = vunpack.c.l.b16 %v378
  %v471 = vunpack.c.h.b16 %v378
  %v472 = vunpack.c.l.b16 %v379
  %v473 = vunpack.c.h.b16 %v379
  %v474 = vunpack.c.l.b16 %v380
  %v475 = vunpack.c.h.b16 %v380
  %v476 = vunpack.c.l.b16 %v381
  %v477 = vunpack.c.h.b16 %v381
  %v478 = vpack.c.b16 %v418, %v414
  %v479 = vpack.c.b16 %v419, %v415
  %v480 = vpack.c.b16 %v420, %v416
  %v481 = vpack.c.b16 %v421, %v417
  %v482 = vpack.c.b16 %v426, %v422
  %v483 = vpack.c.b16 %v427, %v423
  %v484 = vpack.c.b16 %v428, %v424
  %v485 = vpack.c.b16 %v429, %v425
  %v486 = vpack.c.b16 %v434, %v430
  %v487 = vpack.c.b16 %v435, %v431
  %v488 = vpack.c.b16 %v436, %v432
  %v489 = vpack.c.b16 %v437, %v433
  %v490 = vpack.c.b16 %v442, %v438
  %v491 = vpack.c.b16 %v443, %v439
  %v492 = vpack.c.b16 %v444, %v440
  %v493 = vpack.c.b16 %v445, %v441
  %v494 = vpack.c.b16 %v450, %v446
  %v495 = vpack.c.b16 %v451, %v447
  %v496 = vpack.c.b16 %v452, %v448
  %v497 = vpack.c.b16 %v453, %v449
  %v498 = vpack.c.b16 %v458, %v454
  %v499 = vpack.c.b16 %v459, %v455
  %v500 = vpack.c.b16 %v460, %v456
  %v501 = vpack.c.b16 %v461, %v457
  %v502 = vpack.c.b16 %v466, %v462
  %v503 = vpack.c.b16 %v467, %v463
  %v504 = vpack.c.b16 %v468, %v464
  %v505 = vpack.c.b16 %v469, %v465
  %v506 = vpack.c.b16 %v474, %v470
  %v507 = vpack.c.b16 %v475, %v471
  %v508 = vpack.c.b16 %v476, %v472
  %v509 = vpack.c.b16 %v477, %v473
  %542 = vmatpush.bf16.msra.mxu0 %v506
  %543 = vmatpush.bf16.msra.mxu0 %v502
  %544 = vmatpush.bf16.msra.mxu0 %v498
  %545 = vmatpush.bf16.msra.mxu0 %v494
  %546 = vmatpush.bf16.msra.mxu0 %v490
  %547 = vmatpush.bf16.msra.mxu0 %v486
  %548 = vmatpush.bf16.msra.mxu0 %v482
  %549 = vmatpush.bf16.msra.mxu0 %v478
  %550 = vmatmul.bf16.gmra.mxu0 %v342
  %v551 = vpop.f32.mrf.mxu0
  %v552 = vadd.f32 0.0, %v551
  %v553 = vpop.f32.mrf.mxu0
  %v554 = vadd.f32 0.0, %v553
  %555 = vmatmul.bf16.gmra.mxu0 %v343
  %v556 = vpop.f32.mrf.mxu0
  %v557 = vadd.f32 0.0, %v556
  %v558 = vpop.f32.mrf.mxu0
  %v559 = vadd.f32 0.0, %v558
  %560 = vmatmul.bf16.gmra.mxu0 %v344
  %v561 = vpop.f32.mrf.mxu0
  %v562 = vadd.f32 0.0, %v561
  %v563 = vpop.f32.mrf.mxu0
  %v564 = vadd.f32 0.0, %v563
  %565 = vmatmul.bf16.gmra.mxu0 %v345
  %v566 = vpop.f32.mrf.mxu0
  %v567 = vadd.f32 0.0, %v566
  %v568 = vpop.f32.mrf.mxu0
  %v569 = vadd.f32 0.0, %v568
  %570 = vmatmul.bf16.gmra.mxu0 %v346
  %v571 = vpop.f32.mrf.mxu0
  %v572 = vadd.f32 0.0, %v571
  %v573 = vpop.f32.mrf.mxu0
  %v574 = vadd.f32 0.0, %v573
  %575 = vmatmul.bf16.gmra.mxu0 %v347
  %v576 = vpop.f32.mrf.mxu0
  %v577 = vadd.f32 0.0, %v576
  %v578 = vpop.f32.mrf.mxu0
  %v579 = vadd.f32 0.0, %v578
  %580 = vmatmul.bf16.gmra.mxu0 %v348
  %v581 = vpop.f32.mrf.mxu0
  %v582 = vadd.f32 0.0, %v581
  %v583 = vpop.f32.mrf.mxu0
  %v584 = vadd.f32 0.0, %v583
  %585 = vmatmul.bf16.gmra.mxu0 %v349
  %v586 = vpop.f32.mrf.mxu0
  %v587 = vadd.f32 0.0, %v586
  %v588 = vpop.f32.mrf.mxu0
  %v589 = vadd.f32 0.0, %v588
  %590 = vdwg.mxu0
  %591 = vmatpush.bf16.msra.mxu0 %v507
  %592 = vmatpush.bf16.msra.mxu0 %v503
  %593 = vmatpush.bf16.msra.mxu0 %v499
  %594 = vmatpush.bf16.msra.mxu0 %v495
  %595 = vmatpush.bf16.msra.mxu0 %v491
  %596 = vmatpush.bf16.msra.mxu0 %v487
  %597 = vmatpush.bf16.msra.mxu0 %v483
  %598 = vmatpush.bf16.msra.mxu0 %v479
  %599 = vmatmul.bf16.gmra.mxu0 %v342
  %v600 = vpop.f32.mrf.mxu0
  %v601 = vadd.f32 0.0, %v600
  %v602 = vpop.f32.mrf.mxu0
  %v603 = vadd.f32 0.0, %v602
  %604 = vmatmul.bf16.gmra.mxu0 %v343
  %v605 = vpop.f32.mrf.mxu0
  %v606 = vadd.f32 0.0, %v605
  %v607 = vpop.f32.mrf.mxu0
  %v608 = vadd.f32 0.0, %v607
  %609 = vmatmul.bf16.gmra.mxu0 %v344
  %v610 = vpop.f32.mrf.mxu0
  %v611 = vadd.f32 0.0, %v610
  %v612 = vpop.f32.mrf.mxu0
  %v613 = vadd.f32 0.0, %v612
  %614 = vmatmul.bf16.gmra.mxu0 %v345
  %v615 = vpop.f32.mrf.mxu0
  %v616 = vadd.f32 0.0, %v615
  %v617 = vpop.f32.mrf.mxu0
  %v618 = vadd.f32 0.0, %v617
  %619 = vmatmul.bf16.gmra.mxu0 %v346
  %v620 = vpop.f32.mrf.mxu0
  %v621 = vadd.f32 0.0, %v620
  %v622 = vpop.f32.mrf.mxu0
  %v623 = vadd.f32 0.0, %v622
  %624 = vmatmul.bf16.gmra.mxu0 %v347
  %v625 = vpop.f32.mrf.mxu0
  %v626 = vadd.f32 0.0, %v625
  %v627 = vpop.f32.mrf.mxu0
  %v628 = vadd.f32 0.0, %v627
  %629 = vmatmul.bf16.gmra.mxu0 %v348
  %v630 = vpop.f32.mrf.mxu0
  %v631 = vadd.f32 0.0, %v630
  %v632 = vpop.f32.mrf.mxu0
  %v633 = vadd.f32 0.0, %v632
  %634 = vmatmul.bf16.gmra.mxu0 %v349
  %v635 = vpop.f32.mrf.mxu0
  %v636 = vadd.f32 0.0, %v635
  %v637 = vpop.f32.mrf.mxu0
  %v638 = vadd.f32 0.0, %v637
  %639 = vdwg.mxu0
  %640 = vmatpush.bf16.msra.mxu0 %v508
  %641 = vmatpush.bf16.msra.mxu0 %v504
  %642 = vmatpush.bf16.msra.mxu0 %v500
  %643 = vmatpush.bf16.msra.mxu0 %v496
  %644 = vmatpush.bf16.msra.mxu0 %v492
  %645 = vmatpush.bf16.msra.mxu0 %v488
  %646 = vmatpush.bf16.msra.mxu0 %v484
  %647 = vmatpush.bf16.msra.mxu0 %v480
  %648 = vmatmul.bf16.gmra.mxu0 %v342
  %v649 = vpop.f32.mrf.mxu0
  %v650 = vadd.f32 0.0, %v649
  %v651 = vpop.f32.mrf.mxu0
  %v652 = vadd.f32 0.0, %v651
  %653 = vmatmul.bf16.gmra.mxu0 %v343
  %v654 = vpop.f32.mrf.mxu0
  %v655 = vadd.f32 0.0, %v654
  %v656 = vpop.f32.mrf.mxu0
  %v657 = vadd.f32 0.0, %v656
  %658 = vmatmul.bf16.gmra.mxu0 %v344
  %v659 = vpop.f32.mrf.mxu0
  %v660 = vadd.f32 0.0, %v659
  %v661 = vpop.f32.mrf.mxu0
  %v662 = vadd.f32 0.0, %v661
  %663 = vmatmul.bf16.gmra.mxu0 %v345
  %v664 = vpop.f32.mrf.mxu0
  %v665 = vadd.f32 0.0, %v664
  %v666 = vpop.f32.mrf.mxu0
  %v667 = vadd.f32 0.0, %v666
  %668 = vmatmul.bf16.gmra.mxu0 %v346
  %v669 = vpop.f32.mrf.mxu0
  %v670 = vadd.f32 0.0, %v669
  %v671 = vpop.f32.mrf.mxu0
  %v672 = vadd.f32 0.0, %v671
  %673 = vmatmul.bf16.gmra.mxu0 %v347
  %v674 = vpop.f32.mrf.mxu0
  %v675 = vadd.f32 0.0, %v674
  %v676 = vpop.f32.mrf.mxu0
  %v677 = vadd.f32 0.0, %v676
  %678 = vmatmul.bf16.gmra.mxu0 %v348
  %v679 = vpop.f32.mrf.mxu0
  %v680 = vadd.f32 0.0, %v679
  %v681 = vpop.f32.mrf.mxu0
  %v682 = vadd.f32 0.0, %v681
  %683 = vmatmul.bf16.gmra.mxu0 %v349
  %v684 = vpop.f32.mrf.mxu0
  %v685 = vadd.f32 0.0, %v684
  %v686 = vpop.f32.mrf.mxu0
  %v687 = vadd.f32 0.0, %v686
  %688 = vdwg.mxu0
  %689 = vmatpush.bf16.msra.mxu0 %v509
  %690 = vmatpush.bf16.msra.mxu0 %v505
  %691 = vmatpush.bf16.msra.mxu0 %v501
  %692 = vmatpush.bf16.msra.mxu0 %v497
  %693 = vmatpush.bf16.msra.mxu0 %v493
  %694 = vmatpush.bf16.msra.mxu0 %v489
  %695 = vmatpush.bf16.msra.mxu0 %v485
  %696 = vmatpush.bf16.msra.mxu0 %v481
  %697 = vmatmul.bf16.gmra.mxu0 %v342
  %v698 = vpop.f32.mrf.mxu0
  %v699 = vadd.f32 0.0, %v698
  %v700 = vpop.f32.mrf.mxu0
  %v701 = vadd.f32 0.0, %v700
  %702 = vmatmul.bf16.gmra.mxu0 %v343
  %v703 = vpop.f32.mrf.mxu0
  %v704 = vadd.f32 0.0, %v703
  %v705 = vpop.f32.mrf.mxu0
  %v706 = vadd.f32 0.0, %v705
  %707 = vmatmul.bf16.gmra.mxu0 %v344
  %v708 = vpop.f32.mrf.mxu0
  %v709 = vadd.f32 0.0, %v708
  %v710 = vpop.f32.mrf.mxu0
  %v711 = vadd.f32 0.0, %v710
  %712 = vmatmul.bf16.gmra.mxu0 %v345
  %v713 = vpop.f32.mrf.mxu0
  %v714 = vadd.f32 0.0, %v713
  %v715 = vpop.f32.mrf.mxu0
  %v716 = vadd.f32 0.0, %v715
  %717 = vmatmul.bf16.gmra.mxu0 %v346
  %v718 = vpop.f32.mrf.mxu0
  %v719 = vadd.f32 0.0, %v718
  %v720 = vpop.f32.mrf.mxu0
  %v721 = vadd.f32 0.0, %v720
  %722 = vmatmul.bf16.gmra.mxu0 %v347
  %v723 = vpop.f32.mrf.mxu0
  %v724 = vadd.f32 0.0, %v723
  %v725 = vpop.f32.mrf.mxu0
  %v726 = vadd.f32 0.0, %v725
  %727 = vmatmul.bf16.gmra.mxu0 %v348
  %v728 = vpop.f32.mrf.mxu0
  %v729 = vadd.f32 0.0, %v728
  %v730 = vpop.f32.mrf.mxu0
  %v731 = vadd.f32 0.0, %v730
  %732 = vmatmul.bf16.gmra.mxu0 %v349
  %v733 = vpop.f32.mrf.mxu0
  %v734 = vadd.f32 0.0, %v733
  %v735 = vpop.f32.mrf.mxu0
  %v736 = vadd.f32 0.0, %v735
  %737 = vdwg.mxu0
  %v770 = vunpack.c.l.b16 %v310
  %v771 = vunpack.c.h.b16 %v310
  %v772 = vunpack.c.l.b16 %v311
  %v773 = vunpack.c.h.b16 %v311
  %v774 = vunpack.c.l.b16 %v312
  %v775 = vunpack.c.h.b16 %v312
  %v776 = vunpack.c.l.b16 %v313
  %v777 = vunpack.c.h.b16 %v313
  %v778 = vunpack.c.l.b16 %v314
  %v779 = vunpack.c.h.b16 %v314
  %v780 = vunpack.c.l.b16 %v315
  %v781 = vunpack.c.h.b16 %v315
  %v782 = vunpack.c.l.b16 %v316
  %v783 = vunpack.c.h.b16 %v316
  %v784 = vunpack.c.l.b16 %v317
  %v785 = vunpack.c.h.b16 %v317
  %v786 = vunpack.c.l.b16 %v318
  %v787 = vunpack.c.h.b16 %v318
  %v788 = vunpack.c.l.b16 %v319
  %v789 = vunpack.c.h.b16 %v319
  %v790 = vunpack.c.l.b16 %v320
  %v791 = vunpack.c.h.b16 %v320
  %v792 = vunpack.c.l.b16 %v321
  %v793 = vunpack.c.h.b16 %v321
  %v794 = vunpack.c.l.b16 %v322
  %v795 = vunpack.c.h.b16 %v322
  %v796 = vunpack.c.l.b16 %v323
  %v797 = vunpack.c.h.b16 %v323
  %v798 = vunpack.c.l.b16 %v324
  %v799 = vunpack.c.h.b16 %v324
  %v800 = vunpack.c.l.b16 %v325
  %v801 = vunpack.c.h.b16 %v325
  %v802 = vunpack.c.l.b16 %v326
  %v803 = vunpack.c.h.b16 %v326
  %v804 = vunpack.c.l.b16 %v327
  %v805 = vunpack.c.h.b16 %v327
  %v806 = vunpack.c.l.b16 %v328
  %v807 = vunpack.c.h.b16 %v328
  %v808 = vunpack.c.l.b16 %v329
  %v809 = vunpack.c.h.b16 %v329
  %v810 = vunpack.c.l.b16 %v330
  %v811 = vunpack.c.h.b16 %v330
  %v812 = vunpack.c.l.b16 %v331
  %v813 = vunpack.c.h.b16 %v331
  %v814 = vunpack.c.l.b16 %v332
  %v815 = vunpack.c.h.b16 %v332
  %v816 = vunpack.c.l.b16 %v333
  %v817 = vunpack.c.h.b16 %v333
  %v818 = vunpack.c.l.b16 %v334
  %v819 = vunpack.c.h.b16 %v334
  %v820 = vunpack.c.l.b16 %v335
  %v821 = vunpack.c.h.b16 %v335
  %v822 = vunpack.c.l.b16 %v336
  %v823 = vunpack.c.h.b16 %v336
  %v824 = vunpack.c.l.b16 %v337
  %v825 = vunpack.c.h.b16 %v337
  %v826 = vunpack.c.l.b16 %v338
  %v827 = vunpack.c.h.b16 %v338
  %v828 = vunpack.c.l.b16 %v339
  %v829 = vunpack.c.h.b16 %v339
  %v830 = vunpack.c.l.b16 %v340
  %v831 = vunpack.c.h.b16 %v340
  %v832 = vunpack.c.l.b16 %v341
  %v833 = vunpack.c.h.b16 %v341
  %v834 = vpack.c.b16 %v774, %v770
  %v835 = vpack.c.b16 %v775, %v771
  %v836 = vpack.c.b16 %v776, %v772
  %v837 = vpack.c.b16 %v777, %v773
  %v838 = vpack.c.b16 %v782, %v778
  %v839 = vpack.c.b16 %v783, %v779
  %v840 = vpack.c.b16 %v784, %v780
  %v841 = vpack.c.b16 %v785, %v781
  %v842 = vpack.c.b16 %v790, %v786
  %v843 = vpack.c.b16 %v791, %v787
  %v844 = vpack.c.b16 %v792, %v788
  %v845 = vpack.c.b16 %v793, %v789
  %v846 = vpack.c.b16 %v798, %v794
  %v847 = vpack.c.b16 %v799, %v795
  %v848 = vpack.c.b16 %v800, %v796
  %v849 = vpack.c.b16 %v801, %v797
  %v850 = vpack.c.b16 %v806, %v802
  %v851 = vpack.c.b16 %v807, %v803
  %v852 = vpack.c.b16 %v808, %v804
  %v853 = vpack.c.b16 %v809, %v805
  %v854 = vpack.c.b16 %v814, %v810
  %v855 = vpack.c.b16 %v815, %v811
  %v856 = vpack.c.b16 %v816, %v812
  %v857 = vpack.c.b16 %v817, %v813
  %v858 = vpack.c.b16 %v822, %v818
  %v859 = vpack.c.b16 %v823, %v819
  %v860 = vpack.c.b16 %v824, %v820
  %v861 = vpack.c.b16 %v825, %v821
  %v862 = vpack.c.b16 %v830, %v826
  %v863 = vpack.c.b16 %v831, %v827
  %v864 = vpack.c.b16 %v832, %v828
  %v865 = vpack.c.b16 %v833, %v829
  %898 = vmatpush.bf16.msra.mxu0 %v862
  %899 = vmatpush.bf16.msra.mxu0 %v858
  %900 = vmatpush.bf16.msra.mxu0 %v854
  %901 = vmatpush.bf16.msra.mxu0 %v850
  %902 = vmatpush.bf16.msra.mxu0 %v846
  %903 = vmatpush.bf16.msra.mxu0 %v842
  %904 = vmatpush.bf16.msra.mxu0 %v838
  %905 = vmatpush.bf16.msra.mxu0 %v834
  %906 = vmatmul.bf16.gmra.mxu0 %v270
  %v907 = vpop.f32.mrf.mxu0
  %v908 = vadd.f32 %v552, %v907
  %v909 = vpop.f32.mrf.mxu0
  %v910 = vadd.f32 %v554, %v909
  %911 = vmatmul.bf16.gmra.mxu0 %v271
  %v912 = vpop.f32.mrf.mxu0
  %v913 = vadd.f32 %v557, %v912
  %v914 = vpop.f32.mrf.mxu0
  %v915 = vadd.f32 %v559, %v914
  %916 = vmatmul.bf16.gmra.mxu0 %v272
  %v917 = vpop.f32.mrf.mxu0
  %v918 = vadd.f32 %v562, %v917
  %v919 = vpop.f32.mrf.mxu0
  %v920 = vadd.f32 %v564, %v919
  %921 = vmatmul.bf16.gmra.mxu0 %v273
  %v922 = vpop.f32.mrf.mxu0
  %v923 = vadd.f32 %v567, %v922
  %v924 = vpop.f32.mrf.mxu0
  %v925 = vadd.f32 %v569, %v924
  %926 = vmatmul.bf16.gmra.mxu0 %v274
  %v927 = vpop.f32.mrf.mxu0
  %v928 = vadd.f32 %v572, %v927
  %v929 = vpop.f32.mrf.mxu0
  %v930 = vadd.f32 %v574, %v929
  %931 = vmatmul.bf16.gmra.mxu0 %v275
  %v932 = vpop.f32.mrf.mxu0
  %v933 = vadd.f32 %v577, %v932
  %v934 = vpop.f32.mrf.mxu0
  %v935 = vadd.f32 %v579, %v934
  %936 = vmatmul.bf16.gmra.mxu0 %v276
  %v937 = vpop.f32.mrf.mxu0
  %v938 = vadd.f32 %v582, %v937
  %v939 = vpop.f32.mrf.mxu0
  %v940 = vadd.f32 %v584, %v939
  %941 = vmatmul.bf16.gmra.mxu0 %v277
  %v942 = vpop.f32.mrf.mxu0
  %v943 = vadd.f32 %v587, %v942
  %v944 = vpop.f32.mrf.mxu0
  %v945 = vadd.f32 %v589, %v944
  %946 = vdwg.mxu0
  %947 = vmatpush.bf16.msra.mxu0 %v863
  %948 = vmatpush.bf16.msra.mxu0 %v859
  %949 = vmatpush.bf16.msra.mxu0 %v855
  %950 = vmatpush.bf16.msra.mxu0 %v851
  %951 = vmatpush.bf16.msra.mxu0 %v847
  %952 = vmatpush.bf16.msra.mxu0 %v843
  %953 = vmatpush.bf16.msra.mxu0 %v839
  %954 = vmatpush.bf16.msra.mxu0 %v835
  %955 = vmatmul.bf16.gmra.mxu0 %v270
  %v956 = vpop.f32.mrf.mxu0
  %v957 = vadd.f32 %v601, %v956
  %v958 = vpop.f32.mrf.mxu0
  %v959 = vadd.f32 %v603, %v958
  %960 = vmatmul.bf16.gmra.mxu0 %v271
  %v961 = vpop.f32.mrf.mxu0
  %v962 = vadd.f32 %v606, %v961
  %v963 = vpop.f32.mrf.mxu0
  %v964 = vadd.f32 %v608, %v963
  %965 = vmatmul.bf16.gmra.mxu0 %v272
  %v966 = vpop.f32.mrf.mxu0
  %v967 = vadd.f32 %v611, %v966
  %v968 = vpop.f32.mrf.mxu0
  %v969 = vadd.f32 %v613, %v968
  %970 = vmatmul.bf16.gmra.mxu0 %v273
  %v971 = vpop.f32.mrf.mxu0
  %v972 = vadd.f32 %v616, %v971
  %v973 = vpop.f32.mrf.mxu0
  %v974 = vadd.f32 %v618, %v973
  %975 = vmatmul.bf16.gmra.mxu0 %v274
  %v976 = vpop.f32.mrf.mxu0
  %v977 = vadd.f32 %v621, %v976
  %v978 = vpop.f32.mrf.mxu0
  %v979 = vadd.f32 %v623, %v978
  %980 = vmatmul.bf16.gmra.mxu0 %v275
  %v981 = vpop.f32.mrf.mxu0
  %v982 = vadd.f32 %v626, %v981
  %v983 = vpop.f32.mrf.mxu0
  %v984 = vadd.f32 %v628, %v983
  %985 = vmatmul.bf16.gmra.mxu0 %v276
  %v986 = vpop.f32.mrf.mxu0
  %v987 = vadd.f32 %v631, %v986
  %v988 = vpop.f32.mrf.mxu0
  %v989 = vadd.f32 %v633, %v988
  %990 = vmatmul.bf16.gmra.mxu0 %v277
  %v991 = vpop.f32.mrf.mxu0
  %v992 = vadd.f32 %v636, %v991
  %v993 = vpop.f32.mrf.mxu0
  %v994 = vadd.f32 %v638, %v993
  %995 = vdwg.mxu0
  %996 = vmatpush.bf16.msra.mxu0 %v864
  %997 = vmatpush.bf16.msra.mxu0 %v860
  %998 = vmatpush.bf16.msra.mxu0 %v856
  %999 = vmatpush.bf16.msra.mxu0 %v852
  %1000 = vmatpush.bf16.msra.mxu0 %v848
  %1001 = vmatpush.bf16.msra.mxu0 %v844
  %1002 = vmatpush.bf16.msra.mxu0 %v840
  %1003 = vmatpush.bf16.msra.mxu0 %v836
  %1004 = vmatmul.bf16.gmra.mxu0 %v270
  %v1005 = vpop.f32.mrf.mxu0
  %v1006 = vadd.f32 %v650, %v1005
  %v1007 = vpop.f32.mrf.mxu0
  %v1008 = vadd.f32 %v652, %v1007
  %1009 = vmatmul.bf16.gmra.mxu0 %v271
  %v1010 = vpop.f32.mrf.mxu0
  %v1011 = vadd.f32 %v655, %v1010
  %v1012 = vpop.f32.mrf.mxu0
  %v1013 = vadd.f32 %v657, %v1012
  %1014 = vmatmul.bf16.gmra.mxu0 %v272
  %v1015 = vpop.f32.mrf.mxu0
  %v1016 = vadd.f32 %v660, %v1015
  %v1017 = vpop.f32.mrf.mxu0
  %v1018 = vadd.f32 %v662, %v1017
  %1019 = vmatmul.bf16.gmra.mxu0 %v273
  %v1020 = vpop.f32.mrf.mxu0
  %v1021 = vadd.f32 %v665, %v1020
  %v1022 = vpop.f32.mrf.mxu0
  %v1023 = vadd.f32 %v667, %v1022
  %1024 = vmatmul.bf16.gmra.mxu0 %v274
  %v1025 = vpop.f32.mrf.mxu0
  %v1026 = vadd.f32 %v670, %v1025
  %v1027 = vpop.f32.mrf.mxu0
  %v1028 = vadd.f32 %v672, %v1027
  %1029 = vmatmul.bf16.gmra.mxu0 %v275
  %v1030 = vpop.f32.mrf.mxu0
  %v1031 = vadd.f32 %v675, %v1030
  %v1032 = vpop.f32.mrf.mxu0
  %v1033 = vadd.f32 %v677, %v1032
  %1034 = vmatmul.bf16.gmra.mxu0 %v276
  %v1035 = vpop.f32.mrf.mxu0
  %v1036 = vadd.f32 %v680, %v1035
  %v1037 = vpop.f32.mrf.mxu0
  %v1038 = vadd.f32 %v682, %v1037
  %1039 = vmatmul.bf16.gmra.mxu0 %v277
  %v1040 = vpop.f32.mrf.mxu0
  %v1041 = vadd.f32 %v685, %v1040
  %v1042 = vpop.f32.mrf.mxu0
  %v1043 = vadd.f32 %v687, %v1042
  %1044 = vdwg.mxu0
  %1045 = vmatpush.bf16.msra.mxu0 %v865
  %1046 = vmatpush.bf16.msra.mxu0 %v861
  %1047 = vmatpush.bf16.msra.mxu0 %v857
  %1048 = vmatpush.bf16.msra.mxu0 %v853
  %1049 = vmatpush.bf16.msra.mxu0 %v849
  %1050 = vmatpush.bf16.msra.mxu0 %v845
  %1051 = vmatpush.bf16.msra.mxu0 %v841
  %1052 = vmatpush.bf16.msra.mxu0 %v837
  %1053 = vmatmul.bf16.gmra.mxu0 %v270
  %v1054 = vpop.f32.mrf.mxu0
  %v1055 = vadd.f32 %v699, %v1054
  %v1056 = vpop.f32.mrf.mxu0
  %v1057 = vadd.f32 %v701, %v1056
  %1058 = vmatmul.bf16.gmra.mxu0 %v271
  %v1059 = vpop.f32.mrf.mxu0
  %v1060 = vadd.f32 %v704, %v1059
  %v1061 = vpop.f32.mrf.mxu0
  %v1062 = vadd.f32 %v706, %v1061
  %1063 = vmatmul.bf16.gmra.mxu0 %v272
  %v1064 = vpop.f32.mrf.mxu0
  %v1065 = vadd.f32 %v709, %v1064
  %v1066 = vpop.f32.mrf.mxu0
  %v1067 = vadd.f32 %v711, %v1066
  %1068 = vmatmul.bf16.gmra.mxu0 %v273
  %v1069 = vpop.f32.mrf.mxu0
  %v1070 = vadd.f32 %v714, %v1069
  %v1071 = vpop.f32.mrf.mxu0
  %v1072 = vadd.f32 %v716, %v1071
  %1073 = vmatmul.bf16.gmra.mxu0 %v274
  %v1074 = vpop.f32.mrf.mxu0
  %v1075 = vadd.f32 %v719, %v1074
  %v1076 = vpop.f32.mrf.mxu0
  %v1077 = vadd.f32 %v721, %v1076
  %1078 = vmatmul.bf16.gmra.mxu0 %v275
  %v1079 = vpop.f32.mrf.mxu0
  %v1080 = vadd.f32 %v724, %v1079
  %v1081 = vpop.f32.mrf.mxu0
  %v1082 = vadd.f32 %v726, %v1081
  %1083 = vmatmul.bf16.gmra.mxu0 %v276
  %v1084 = vpop.f32.mrf.mxu0
  %v1085 = vadd.f32 %v729, %v1084
  %v1086 = vpop.f32.mrf.mxu0
  %v1087 = vadd.f32 %v731, %v1086
  %1088 = vmatmul.bf16.gmra.mxu0 %v277
  %v1089 = vpop.f32.mrf.mxu0
  %v1090 = vadd.f32 %v734, %v1089
  %v1091 = vpop.f32.mrf.mxu0
  %v1092 = vadd.f32 %v736, %v1091
  %1093 = vdwg.mxu0
  %v1094 = vld [vmem:[%s6] sm:$0xf]
  %v1096 = vperm.slane %v1094, 0
  %v1097 = vperm.slane %v1094, 1
  %v1098 = vperm.slane %v1094, 2
  %v1099 = vperm.slane %v1094, 3
  %v1104 = vadd.f32 %v908, %v1096
  %v1105 = vadd.f32 %v957, %v1097
  %v1106 = vadd.f32 %v1006, %v1098
  %v1107 = vadd.f32 %v1055, %v1099
  %v1108 = vadd.f32 %v910, %v1096
  %v1109 = vadd.f32 %v959, %v1097
  %v1110 = vadd.f32 %v1008, %v1098
  %v1111 = vadd.f32 %v1057, %v1099
  %v1112 = vadd.f32 %v913, %v1096
  %v1113 = vadd.f32 %v962, %v1097
  %v1114 = vadd.f32 %v1011, %v1098
  %v1115 = vadd.f32 %v1060, %v1099
  %v1116 = vadd.f32 %v915, %v1096
  %v1117 = vadd.f32 %v964, %v1097
  %v1118 = vadd.f32 %v1013, %v1098
  %v1119 = vadd.f32 %v1062, %v1099
  %v1120 = vadd.f32 %v918, %v1096
  %v1121 = vadd.f32 %v967, %v1097
  %v1122 = vadd.f32 %v1016, %v1098
  %v1123 = vadd.f32 %v1065, %v1099
  %v1124 = vadd.f32 %v920, %v1096
  %v1125 = vadd.f32 %v969, %v1097
  %v1126 = vadd.f32 %v1018, %v1098
  %v1127 = vadd.f32 %v1067, %v1099
  %v1128 = vadd.f32 %v923, %v1096
  %v1129 = vadd.f32 %v972, %v1097
  %v1130 = vadd.f32 %v1021, %v1098
  %v1131 = vadd.f32 %v1070, %v1099
  %v1132 = vadd.f32 %v925, %v1096
  %v1133 = vadd.f32 %v974, %v1097
  %v1134 = vadd.f32 %v1023, %v1098
  %v1135 = vadd.f32 %v1072, %v1099
  %v1136 = vadd.f32 %v928, %v1096
  %v1137 = vadd.f32 %v977, %v1097
  %v1138 = vadd.f32 %v1026, %v1098
  %v1139 = vadd.f32 %v1075, %v1099
  %v1140 = vadd.f32 %v930, %v1096
  %v1141 = vadd.f32 %v979, %v1097
  %v1142 = vadd.f32 %v1028, %v1098
  %v1143 = vadd.f32 %v1077, %v1099
  %v1144 = vadd.f32 %v933, %v1096
  %v1145 = vadd.f32 %v982, %v1097
  %v1146 = vadd.f32 %v1031, %v1098
  %v1147 = vadd.f32 %v1080, %v1099
  %v1148 = vadd.f32 %v935, %v1096
  %v1149 = vadd.f32 %v984, %v1097
  %v1150 = vadd.f32 %v1033, %v1098
  %v1151 = vadd.f32 %v1082, %v1099
  %v1152 = vadd.f32 %v938, %v1096
  %v1153 = vadd.f32 %v987, %v1097
  %v1154 = vadd.f32 %v1036, %v1098
  %v1155 = vadd.f32 %v1085, %v1099
  %v1156 = vadd.f32 %v940, %v1096
  %v1157 = vadd.f32 %v989, %v1097
  %v1158 = vadd.f32 %v1038, %v1098
  %v1159 = vadd.f32 %v1087, %v1099
  %v1160 = vadd.f32 %v943, %v1096
  %v1161 = vadd.f32 %v992, %v1097
  %v1162 = vadd.f32 %v1041, %v1098
  %v1163 = vadd.f32 %v1090, %v1099
  %v1164 = vadd.f32 %v945, %v1096
  %v1165 = vadd.f32 %v994, %v1097
  %v1166 = vadd.f32 %v1043, %v1098
  %v1167 = vadd.f32 %v1092, %v1099
  %v1168 = vxor.u32 %v1104, 2147483648
  %v1169 = vxor.u32 %v1108, 2147483648
  %v1170 = vxor.u32 %v1112, 2147483648
  %v1171 = vxor.u32 %v1116, 2147483648
  %v1172 = vxor.u32 %v1120, 2147483648
  %v1173 = vxor.u32 %v1124, 2147483648
  %v1174 = vxor.u32 %v1128, 2147483648
  %v1175 = vxor.u32 %v1132, 2147483648
  %v1176 = vxor.u32 %v1136, 2147483648
  %v1177 = vxor.u32 %v1140, 2147483648
  %v1178 = vxor.u32 %v1144, 2147483648
  %v1179 = vxor.u32 %v1148, 2147483648
  %v1180 = vxor.u32 %v1152, 2147483648
  %v1181 = vxor.u32 %v1156, 2147483648
  %v1182 = vxor.u32 %v1160, 2147483648
  %v1183 = vxor.u32 %v1164, 2147483648
  %v1184 = vmul.f32 %v1168, 1.442695
  %v1185 = vpow.pop %v1184
  %v1186 = vmul.f32 %v1169, 1.442695
  %v1187 = vpow.pop %v1186
  %v1188 = vmul.f32 %v1170, 1.442695
  %v1189 = vpow.pop %v1188
  %v1190 = vmul.f32 %v1171, 1.442695
  %v1191 = vpow.pop %v1190
  %v1192 = vmul.f32 %v1172, 1.442695
  %v1193 = vpow.pop %v1192
  %v1194 = vmul.f32 %v1173, 1.442695
  %v1195 = vpow.pop %v1194
  %v1196 = vmul.f32 %v1174, 1.442695
  %v1197 = vpow.pop %v1196
  %v1198 = vmul.f32 %v1175, 1.442695
  %v1199 = vpow.pop %v1198
  %v1200 = vmul.f32 %v1176, 1.442695
  %v1201 = vpow.pop %v1200
  %v1202 = vmul.f32 %v1177, 1.442695
  %v1203 = vpow.pop %v1202
  %v1204 = vmul.f32 %v1178, 1.442695
  %v1205 = vpow.pop %v1204
  %v1206 = vmul.f32 %v1179, 1.442695
  %v1207 = vpow.pop %v1206
  %v1208 = vmul.f32 %v1180, 1.442695
  %v1209 = vpow.pop %v1208
  %v1210 = vmul.f32 %v1181, 1.442695
  %v1211 = vpow.pop %v1210
  %v1212 = vmul.f32 %v1182, 1.442695
  %v1213 = vpow.pop %v1212
  %v1214 = vmul.f32 %v1183, 1.442695
  %v1215 = vpow.pop %v1214
  %v1216 = vadd.f32 %v1185, 1.0
  %v1217 = vadd.f32 %v1187, 1.0
  %v1218 = vadd.f32 %v1189, 1.0
  %v1219 = vadd.f32 %v1191, 1.0
  %v1220 = vadd.f32 %v1193, 1.0
  %v1221 = vadd.f32 %v1195, 1.0
  %v1222 = vadd.f32 %v1197, 1.0
  %v1223 = vadd.f32 %v1199, 1.0
  %v1224 = vadd.f32 %v1201, 1.0
  %v1225 = vadd.f32 %v1203, 1.0
  %v1226 = vadd.f32 %v1205, 1.0
  %v1227 = vadd.f32 %v1207, 1.0
  %v1228 = vadd.f32 %v1209, 1.0
  %v1229 = vadd.f32 %v1211, 1.0
  %v1230 = vadd.f32 %v1213, 1.0
  %v1231 = vadd.f32 %v1215, 1.0
  %v1232 = vrcp.pop %v1216
  %v1233 = vmul.f32 %v1216, %v1232
  %v1234 = vsub.f32 1.0, %v1233
  %v1235 = vmul.f32 %v1232, %v1234
  %v1236 = vadd.f32 %v1232, %v1235
  %vm1237 = vweird.f32 %v1216
  %vm1238 = vweird.f32 %v1232
  %vm1239 = vmor %vm1237, %vm1238
  %v1240 = vsel %vm1239, %v1232, %v1236
  %v1241 = vand.u32 2147483647, %v1216
  %vm1242 = vcmp.eq.f32.partialorder %v1241, 8.507059e+37
  %v1243 = vand.u32 %v1216, 2147483648
  %v1244 = vor.u32 1.1754944e-38, %v1243
  %v1245 = vsel %vm1242, %v1244, %v1240
  %v1246 = vmul.f32 1.0, %v1245
  %v1247 = vrcp.pop %v1217
  %v1248 = vmul.f32 %v1217, %v1247
  %v1249 = vsub.f32 1.0, %v1248
  %v1250 = vmul.f32 %v1247, %v1249
  %v1251 = vadd.f32 %v1247, %v1250
  %vm1252 = vweird.f32 %v1217
  %vm1253 = vweird.f32 %v1247
  %vm1254 = vmor %vm1252, %vm1253
  %v1255 = vsel %vm1254, %v1247, %v1251
  %v1256 = vand.u32 2147483647, %v1217
  %vm1257 = vcmp.eq.f32.partialorder %v1256, 8.507059e+37
  %v1258 = vand.u32 %v1217, 2147483648
  %v1259 = vor.u32 1.1754944e-38, %v1258
  %v1260 = vsel %vm1257, %v1259, %v1255
  %v1261 = vmul.f32 1.0, %v1260
  %v1262 = vrcp.pop %v1218
  %v1263 = vmul.f32 %v1218, %v1262
  %v1264 = vsub.f32 1.0, %v1263
  %v1265 = vmul.f32 %v1262, %v1264
  %v1266 = vadd.f32 %v1262, %v1265
  %vm1267 = vweird.f32 %v1218
  %vm1268 = vweird.f32 %v1262
  %vm1269 = vmor %vm1267, %vm1268
  %v1270 = vsel %vm1269, %v1262, %v1266
  %v1271 = vand.u32 2147483647, %v1218
  %vm1272 = vcmp.eq.f32.partialorder %v1271, 8.507059e+37
  %v1273 = vand.u32 %v1218, 2147483648
  %v1274 = vor.u32 1.1754944e-38, %v1273
  %v1275 = vsel %vm1272, %v1274, %v1270
  %v1276 = vmul.f32 1.0, %v1275
  %v1277 = vrcp.pop %v1219
  %v1278 = vmul.f32 %v1219, %v1277
  %v1279 = vsub.f32 1.0, %v1278
  %v1280 = vmul.f32 %v1277, %v1279
  %v1281 = vadd.f32 %v1277, %v1280
  %vm1282 = vweird.f32 %v1219
  %vm1283 = vweird.f32 %v1277
  %vm1284 = vmor %vm1282, %vm1283
  %v1285 = vsel %vm1284, %v1277, %v1281
  %v1286 = vand.u32 2147483647, %v1219
  %vm1287 = vcmp.eq.f32.partialorder %v1286, 8.507059e+37
  %v1288 = vand.u32 %v1219, 2147483648
  %v1289 = vor.u32 1.1754944e-38, %v1288
  %v1290 = vsel %vm1287, %v1289, %v1285
  %v1291 = vmul.f32 1.0, %v1290
  %v1292 = vrcp.pop %v1220
  %v1293 = vmul.f32 %v1220, %v1292
  %v1294 = vsub.f32 1.0, %v1293
  %v1295 = vmul.f32 %v1292, %v1294
  %v1296 = vadd.f32 %v1292, %v1295
  %vm1297 = vweird.f32 %v1220
  %vm1298 = vweird.f32 %v1292
  %vm1299 = vmor %vm1297, %vm1298
  %v1300 = vsel %vm1299, %v1292, %v1296
  %v1301 = vand.u32 2147483647, %v1220
  %vm1302 = vcmp.eq.f32.partialorder %v1301, 8.507059e+37
  %v1303 = vand.u32 %v1220, 2147483648
  %v1304 = vor.u32 1.1754944e-38, %v1303
  %v1305 = vsel %vm1302, %v1304, %v1300
  %v1306 = vmul.f32 1.0, %v1305
  %v1307 = vrcp.pop %v1221
  %v1308 = vmul.f32 %v1221, %v1307
  %v1309 = vsub.f32 1.0, %v1308
  %v1310 = vmul.f32 %v1307, %v1309
  %v1311 = vadd.f32 %v1307, %v1310
  %vm1312 = vweird.f32 %v1221
  %vm1313 = vweird.f32 %v1307
  %vm1314 = vmor %vm1312, %vm1313
  %v1315 = vsel %vm1314, %v1307, %v1311
  %v1316 = vand.u32 2147483647, %v1221
  %vm1317 = vcmp.eq.f32.partialorder %v1316, 8.507059e+37
  %v1318 = vand.u32 %v1221, 2147483648
  %v1319 = vor.u32 1.1754944e-38, %v1318
  %v1320 = vsel %vm1317, %v1319, %v1315
  %v1321 = vmul.f32 1.0, %v1320
  %v1322 = vrcp.pop %v1222
  %v1323 = vmul.f32 %v1222, %v1322
  %v1324 = vsub.f32 1.0, %v1323
  %v1325 = vmul.f32 %v1322, %v1324
  %v1326 = vadd.f32 %v1322, %v1325
  %vm1327 = vweird.f32 %v1222
  %vm1328 = vweird.f32 %v1322
  %vm1329 = vmor %vm1327, %vm1328
  %v1330 = vsel %vm1329, %v1322, %v1326
  %v1331 = vand.u32 2147483647, %v1222
  %vm1332 = vcmp.eq.f32.partialorder %v1331, 8.507059e+37
  %v1333 = vand.u32 %v1222, 2147483648
  %v1334 = vor.u32 1.1754944e-38, %v1333
  %v1335 = vsel %vm1332, %v1334, %v1330
  %v1336 = vmul.f32 1.0, %v1335
  %v1337 = vrcp.pop %v1223
  %v1338 = vmul.f32 %v1223, %v1337
  %v1339 = vsub.f32 1.0, %v1338
  %v1340 = vmul.f32 %v1337, %v1339
  %v1341 = vadd.f32 %v1337, %v1340
  %vm1342 = vweird.f32 %v1223
  %vm1343 = vweird.f32 %v1337
  %vm1344 = vmor %vm1342, %vm1343
  %v1345 = vsel %vm1344, %v1337, %v1341
  %v1346 = vand.u32 2147483647, %v1223
  %vm1347 = vcmp.eq.f32.partialorder %v1346, 8.507059e+37
  %v1348 = vand.u32 %v1223, 2147483648
  %v1349 = vor.u32 1.1754944e-38, %v1348
  %v1350 = vsel %vm1347, %v1349, %v1345
  %v1351 = vmul.f32 1.0, %v1350
  %v1352 = vrcp.pop %v1224
  %v1353 = vmul.f32 %v1224, %v1352
  %v1354 = vsub.f32 1.0, %v1353
  %v1355 = vmul.f32 %v1352, %v1354
  %v1356 = vadd.f32 %v1352, %v1355
  %vm1357 = vweird.f32 %v1224
  %vm1358 = vweird.f32 %v1352
  %vm1359 = vmor %vm1357, %vm1358
  %v1360 = vsel %vm1359, %v1352, %v1356
  %v1361 = vand.u32 2147483647, %v1224
  %vm1362 = vcmp.eq.f32.partialorder %v1361, 8.507059e+37
  %v1363 = vand.u32 %v1224, 2147483648
  %v1364 = vor.u32 1.1754944e-38, %v1363
  %v1365 = vsel %vm1362, %v1364, %v1360
  %v1366 = vmul.f32 1.0, %v1365
  %v1367 = vrcp.pop %v1225
  %v1368 = vmul.f32 %v1225, %v1367
  %v1369 = vsub.f32 1.0, %v1368
  %v1370 = vmul.f32 %v1367, %v1369
  %v1371 = vadd.f32 %v1367, %v1370
  %vm1372 = vweird.f32 %v1225
  %vm1373 = vweird.f32 %v1367
  %vm1374 = vmor %vm1372, %vm1373
  %v1375 = vsel %vm1374, %v1367, %v1371
  %v1376 = vand.u32 2147483647, %v1225
  %vm1377 = vcmp.eq.f32.partialorder %v1376, 8.507059e+37
  %v1378 = vand.u32 %v1225, 2147483648
  %v1379 = vor.u32 1.1754944e-38, %v1378
  %v1380 = vsel %vm1377, %v1379, %v1375
  %v1381 = vmul.f32 1.0, %v1380
  %v1382 = vrcp.pop %v1226
  %v1383 = vmul.f32 %v1226, %v1382
  %v1384 = vsub.f32 1.0, %v1383
  %v1385 = vmul.f32 %v1382, %v1384
  %v1386 = vadd.f32 %v1382, %v1385
  %vm1387 = vweird.f32 %v1226
  %vm1388 = vweird.f32 %v1382
  %vm1389 = vmor %vm1387, %vm1388
  %v1390 = vsel %vm1389, %v1382, %v1386
  %v1391 = vand.u32 2147483647, %v1226
  %vm1392 = vcmp.eq.f32.partialorder %v1391, 8.507059e+37
  %v1393 = vand.u32 %v1226, 2147483648
  %v1394 = vor.u32 1.1754944e-38, %v1393
  %v1395 = vsel %vm1392, %v1394, %v1390
  %v1396 = vmul.f32 1.0, %v1395
  %v1397 = vrcp.pop %v1227
  %v1398 = vmul.f32 %v1227, %v1397
  %v1399 = vsub.f32 1.0, %v1398
  %v1400 = vmul.f32 %v1397, %v1399
  %v1401 = vadd.f32 %v1397, %v1400
  %vm1402 = vweird.f32 %v1227
  %vm1403 = vweird.f32 %v1397
  %vm1404 = vmor %vm1402, %vm1403
  %v1405 = vsel %vm1404, %v1397, %v1401
  %v1406 = vand.u32 2147483647, %v1227
  %vm1407 = vcmp.eq.f32.partialorder %v1406, 8.507059e+37
  %v1408 = vand.u32 %v1227, 2147483648
  %v1409 = vor.u32 1.1754944e-38, %v1408
  %v1410 = vsel %vm1407, %v1409, %v1405
  %v1411 = vmul.f32 1.0, %v1410
  %v1412 = vrcp.pop %v1228
  %v1413 = vmul.f32 %v1228, %v1412
  %v1414 = vsub.f32 1.0, %v1413
  %v1415 = vmul.f32 %v1412, %v1414
  %v1416 = vadd.f32 %v1412, %v1415
  %vm1417 = vweird.f32 %v1228
  %vm1418 = vweird.f32 %v1412
  %vm1419 = vmor %vm1417, %vm1418
  %v1420 = vsel %vm1419, %v1412, %v1416
  %v1421 = vand.u32 2147483647, %v1228
  %vm1422 = vcmp.eq.f32.partialorder %v1421, 8.507059e+37
  %v1423 = vand.u32 %v1228, 2147483648
  %v1424 = vor.u32 1.1754944e-38, %v1423
  %v1425 = vsel %vm1422, %v1424, %v1420
  %v1426 = vmul.f32 1.0, %v1425
  %v1427 = vrcp.pop %v1229
  %v1428 = vmul.f32 %v1229, %v1427
  %v1429 = vsub.f32 1.0, %v1428
  %v1430 = vmul.f32 %v1427, %v1429
  %v1431 = vadd.f32 %v1427, %v1430
  %vm1432 = vweird.f32 %v1229
  %vm1433 = vweird.f32 %v1427
  %vm1434 = vmor %vm1432, %vm1433
  %v1435 = vsel %vm1434, %v1427, %v1431
  %v1436 = vand.u32 2147483647, %v1229
  %vm1437 = vcmp.eq.f32.partialorder %v1436, 8.507059e+37
  %v1438 = vand.u32 %v1229, 2147483648
  %v1439 = vor.u32 1.1754944e-38, %v1438
  %v1440 = vsel %vm1437, %v1439, %v1435
  %v1441 = vmul.f32 1.0, %v1440
  %v1442 = vrcp.pop %v1230
  %v1443 = vmul.f32 %v1230, %v1442
  %v1444 = vsub.f32 1.0, %v1443
  %v1445 = vmul.f32 %v1442, %v1444
  %v1446 = vadd.f32 %v1442, %v1445
  %vm1447 = vweird.f32 %v1230
  %vm1448 = vweird.f32 %v1442
  %vm1449 = vmor %vm1447, %vm1448
  %v1450 = vsel %vm1449, %v1442, %v1446
  %v1451 = vand.u32 2147483647, %v1230
  %vm1452 = vcmp.eq.f32.partialorder %v1451, 8.507059e+37
  %v1453 = vand.u32 %v1230, 2147483648
  %v1454 = vor.u32 1.1754944e-38, %v1453
  %v1455 = vsel %vm1452, %v1454, %v1450
  %v1456 = vmul.f32 1.0, %v1455
  %v1457 = vrcp.pop %v1231
  %v1458 = vmul.f32 %v1231, %v1457
  %v1459 = vsub.f32 1.0, %v1458
  %v1460 = vmul.f32 %v1457, %v1459
  %v1461 = vadd.f32 %v1457, %v1460
  %vm1462 = vweird.f32 %v1231
  %vm1463 = vweird.f32 %v1457
  %vm1464 = vmor %vm1462, %vm1463
  %v1465 = vsel %vm1464, %v1457, %v1461
  %v1466 = vand.u32 2147483647, %v1231
  %vm1467 = vcmp.eq.f32.partialorder %v1466, 8.507059e+37
  %v1468 = vand.u32 %v1231, 2147483648
  %v1469 = vor.u32 1.1754944e-38, %v1468
  %v1470 = vsel %vm1467, %v1469, %v1465
  %v1471 = vmul.f32 1.0, %v1470
  %v1472 = vxor.u32 %v1105, 2147483648
  %v1473 = vxor.u32 %v1109, 2147483648
  %v1474 = vxor.u32 %v1113, 2147483648
  %v1475 = vxor.u32 %v1117, 2147483648
  %v1476 = vxor.u32 %v1121, 2147483648
  %v1477 = vxor.u32 %v1125, 2147483648
  %v1478 = vxor.u32 %v1129, 2147483648
  %v1479 = vxor.u32 %v1133, 2147483648
  %v1480 = vxor.u32 %v1137, 2147483648
  %v1481 = vxor.u32 %v1141, 2147483648
  %v1482 = vxor.u32 %v1145, 2147483648
  %v1483 = vxor.u32 %v1149, 2147483648
  %v1484 = vxor.u32 %v1153, 2147483648
  %v1485 = vxor.u32 %v1157, 2147483648
  %v1486 = vxor.u32 %v1161, 2147483648
  %v1487 = vxor.u32 %v1165, 2147483648
  %v1488 = vmul.f32 %v1472, 1.442695
  %v1489 = vpow.pop %v1488
  %v1490 = vmul.f32 %v1473, 1.442695
  %v1491 = vpow.pop %v1490
  %v1492 = vmul.f32 %v1474, 1.442695
  %v1493 = vpow.pop %v1492
  %v1494 = vmul.f32 %v1475, 1.442695
  %v1495 = vpow.pop %v1494
  %v1496 = vmul.f32 %v1476, 1.442695
  %v1497 = vpow.pop %v1496
  %v1498 = vmul.f32 %v1477, 1.442695
  %v1499 = vpow.pop %v1498
  %v1500 = vmul.f32 %v1478, 1.442695
  %v1501 = vpow.pop %v1500
  %v1502 = vmul.f32 %v1479, 1.442695
  %v1503 = vpow.pop %v1502
  %v1504 = vmul.f32 %v1480, 1.442695
  %v1505 = vpow.pop %v1504
  %v1506 = vmul.f32 %v1481, 1.442695
  %v1507 = vpow.pop %v1506
  %v1508 = vmul.f32 %v1482, 1.442695
  %v1509 = vpow.pop %v1508
  %v1510 = vmul.f32 %v1483, 1.442695
  %v1511 = vpow.pop %v1510
  %v1512 = vmul.f32 %v1484, 1.442695
  %v1513 = vpow.pop %v1512
  %v1514 = vmul.f32 %v1485, 1.442695
  %v1515 = vpow.pop %v1514
  %v1516 = vmul.f32 %v1486, 1.442695
  %v1517 = vpow.pop %v1516
  %v1518 = vmul.f32 %v1487, 1.442695
  %v1519 = vpow.pop %v1518
  %v1520 = vadd.f32 %v1489, 1.0
  %v1521 = vadd.f32 %v1491, 1.0
  %v1522 = vadd.f32 %v1493, 1.0
  %v1523 = vadd.f32 %v1495, 1.0
  %v1524 = vadd.f32 %v1497, 1.0
  %v1525 = vadd.f32 %v1499, 1.0
  %v1526 = vadd.f32 %v1501, 1.0
  %v1527 = vadd.f32 %v1503, 1.0
  %v1528 = vadd.f32 %v1505, 1.0
  %v1529 = vadd.f32 %v1507, 1.0
  %v1530 = vadd.f32 %v1509, 1.0
  %v1531 = vadd.f32 %v1511, 1.0
  %v1532 = vadd.f32 %v1513, 1.0
  %v1533 = vadd.f32 %v1515, 1.0
  %v1534 = vadd.f32 %v1517, 1.0
  %v1535 = vadd.f32 %v1519, 1.0
  %v1536 = vrcp.pop %v1520
  %v1537 = vmul.f32 %v1520, %v1536
  %v1538 = vsub.f32 1.0, %v1537
  %v1539 = vmul.f32 %v1536, %v1538
  %v1540 = vadd.f32 %v1536, %v1539
  %vm1541 = vweird.f32 %v1520
  %vm1542 = vweird.f32 %v1536
  %vm1543 = vmor %vm1541, %vm1542
  %v1544 = vsel %vm1543, %v1536, %v1540
  %v1545 = vand.u32 2147483647, %v1520
  %vm1546 = vcmp.eq.f32.partialorder %v1545, 8.507059e+37
  %v1547 = vand.u32 %v1520, 2147483648
  %v1548 = vor.u32 1.1754944e-38, %v1547
  %v1549 = vsel %vm1546, %v1548, %v1544
  %v1550 = vmul.f32 1.0, %v1549
  %v1551 = vrcp.pop %v1521
  %v1552 = vmul.f32 %v1521, %v1551
  %v1553 = vsub.f32 1.0, %v1552
  %v1554 = vmul.f32 %v1551, %v1553
  %v1555 = vadd.f32 %v1551, %v1554
  %vm1556 = vweird.f32 %v1521
  %vm1557 = vweird.f32 %v1551
  %vm1558 = vmor %vm1556, %vm1557
  %v1559 = vsel %vm1558, %v1551, %v1555
  %v1560 = vand.u32 2147483647, %v1521
  %vm1561 = vcmp.eq.f32.partialorder %v1560, 8.507059e+37
  %v1562 = vand.u32 %v1521, 2147483648
  %v1563 = vor.u32 1.1754944e-38, %v1562
  %v1564 = vsel %vm1561, %v1563, %v1559
  %v1565 = vmul.f32 1.0, %v1564
  %v1566 = vrcp.pop %v1522
  %v1567 = vmul.f32 %v1522, %v1566
  %v1568 = vsub.f32 1.0, %v1567
  %v1569 = vmul.f32 %v1566, %v1568
  %v1570 = vadd.f32 %v1566, %v1569
  %vm1571 = vweird.f32 %v1522
  %vm1572 = vweird.f32 %v1566
  %vm1573 = vmor %vm1571, %vm1572
  %v1574 = vsel %vm1573, %v1566, %v1570
  %v1575 = vand.u32 2147483647, %v1522
  %vm1576 = vcmp.eq.f32.partialorder %v1575, 8.507059e+37
  %v1577 = vand.u32 %v1522, 2147483648
  %v1578 = vor.u32 1.1754944e-38, %v1577
  %v1579 = vsel %vm1576, %v1578, %v1574
  %v1580 = vmul.f32 1.0, %v1579
  %v1581 = vrcp.pop %v1523
  %v1582 = vmul.f32 %v1523, %v1581
  %v1583 = vsub.f32 1.0, %v1582
  %v1584 = vmul.f32 %v1581, %v1583
  %v1585 = vadd.f32 %v1581, %v1584
  %vm1586 = vweird.f32 %v1523
  %vm1587 = vweird.f32 %v1581
  %vm1588 = vmor %vm1586, %vm1587
  %v1589 = vsel %vm1588, %v1581, %v1585
  %v1590 = vand.u32 2147483647, %v1523
  %vm1591 = vcmp.eq.f32.partialorder %v1590, 8.507059e+37
  %v1592 = vand.u32 %v1523, 2147483648
  %v1593 = vor.u32 1.1754944e-38, %v1592
  %v1594 = vsel %vm1591, %v1593, %v1589
  %v1595 = vmul.f32 1.0, %v1594
  %v1596 = vrcp.pop %v1524
  %v1597 = vmul.f32 %v1524, %v1596
  %v1598 = vsub.f32 1.0, %v1597
  %v1599 = vmul.f32 %v1596, %v1598
  %v1600 = vadd.f32 %v1596, %v1599
  %vm1601 = vweird.f32 %v1524
  %vm1602 = vweird.f32 %v1596
  %vm1603 = vmor %vm1601, %vm1602
  %v1604 = vsel %vm1603, %v1596, %v1600
  %v1605 = vand.u32 2147483647, %v1524
  %vm1606 = vcmp.eq.f32.partialorder %v1605, 8.507059e+37
  %v1607 = vand.u32 %v1524, 2147483648
  %v1608 = vor.u32 1.1754944e-38, %v1607
  %v1609 = vsel %vm1606, %v1608, %v1604
  %v1610 = vmul.f32 1.0, %v1609
  %v1611 = vrcp.pop %v1525
  %v1612 = vmul.f32 %v1525, %v1611
  %v1613 = vsub.f32 1.0, %v1612
  %v1614 = vmul.f32 %v1611, %v1613
  %v1615 = vadd.f32 %v1611, %v1614
  %vm1616 = vweird.f32 %v1525
  %vm1617 = vweird.f32 %v1611
  %vm1618 = vmor %vm1616, %vm1617
  %v1619 = vsel %vm1618, %v1611, %v1615
  %v1620 = vand.u32 2147483647, %v1525
  %vm1621 = vcmp.eq.f32.partialorder %v1620, 8.507059e+37
  %v1622 = vand.u32 %v1525, 2147483648
  %v1623 = vor.u32 1.1754944e-38, %v1622
  %v1624 = vsel %vm1621, %v1623, %v1619
  %v1625 = vmul.f32 1.0, %v1624
  %v1626 = vrcp.pop %v1526
  %v1627 = vmul.f32 %v1526, %v1626
  %v1628 = vsub.f32 1.0, %v1627
  %v1629 = vmul.f32 %v1626, %v1628
  %v1630 = vadd.f32 %v1626, %v1629
  %vm1631 = vweird.f32 %v1526
  %vm1632 = vweird.f32 %v1626
  %vm1633 = vmor %vm1631, %vm1632
  %v1634 = vsel %vm1633, %v1626, %v1630
  %v1635 = vand.u32 2147483647, %v1526
  %vm1636 = vcmp.eq.f32.partialorder %v1635, 8.507059e+37
  %v1637 = vand.u32 %v1526, 2147483648
  %v1638 = vor.u32 1.1754944e-38, %v1637
  %v1639 = vsel %vm1636, %v1638, %v1634
  %v1640 = vmul.f32 1.0, %v1639
  %v1641 = vrcp.pop %v1527
  %v1642 = vmul.f32 %v1527, %v1641
  %v1643 = vsub.f32 1.0, %v1642
  %v1644 = vmul.f32 %v1641, %v1643
  %v1645 = vadd.f32 %v1641, %v1644
  %vm1646 = vweird.f32 %v1527
  %vm1647 = vweird.f32 %v1641
  %vm1648 = vmor %vm1646, %vm1647
  %v1649 = vsel %vm1648, %v1641, %v1645
  %v1650 = vand.u32 2147483647, %v1527
  %vm1651 = vcmp.eq.f32.partialorder %v1650, 8.507059e+37
  %v1652 = vand.u32 %v1527, 2147483648
  %v1653 = vor.u32 1.1754944e-38, %v1652
  %v1654 = vsel %vm1651, %v1653, %v1649
  %v1655 = vmul.f32 1.0, %v1654
  %v1656 = vrcp.pop %v1528
  %v1657 = vmul.f32 %v1528, %v1656
  %v1658 = vsub.f32 1.0, %v1657
  %v1659 = vmul.f32 %v1656, %v1658
  %v1660 = vadd.f32 %v1656, %v1659
  %vm1661 = vweird.f32 %v1528
  %vm1662 = vweird.f32 %v1656
  %vm1663 = vmor %vm1661, %vm1662
  %v1664 = vsel %vm1663, %v1656, %v1660
  %v1665 = vand.u32 2147483647, %v1528
  %vm1666 = vcmp.eq.f32.partialorder %v1665, 8.507059e+37
  %v1667 = vand.u32 %v1528, 2147483648
  %v1668 = vor.u32 1.1754944e-38, %v1667
  %v1669 = vsel %vm1666, %v1668, %v1664
  %v1670 = vmul.f32 1.0, %v1669
  %v1671 = vrcp.pop %v1529
  %v1672 = vmul.f32 %v1529, %v1671
  %v1673 = vsub.f32 1.0, %v1672
  %v1674 = vmul.f32 %v1671, %v1673
  %v1675 = vadd.f32 %v1671, %v1674
  %vm1676 = vweird.f32 %v1529
  %vm1677 = vweird.f32 %v1671
  %vm1678 = vmor %vm1676, %vm1677
  %v1679 = vsel %vm1678, %v1671, %v1675
  %v1680 = vand.u32 2147483647, %v1529
  %vm1681 = vcmp.eq.f32.partialorder %v1680, 8.507059e+37
  %v1682 = vand.u32 %v1529, 2147483648
  %v1683 = vor.u32 1.1754944e-38, %v1682
  %v1684 = vsel %vm1681, %v1683, %v1679
  %v1685 = vmul.f32 1.0, %v1684
  %v1686 = vrcp.pop %v1530
  %v1687 = vmul.f32 %v1530, %v1686
  %v1688 = vsub.f32 1.0, %v1687
  %v1689 = vmul.f32 %v1686, %v1688
  %v1690 = vadd.f32 %v1686, %v1689
  %vm1691 = vweird.f32 %v1530
  %vm1692 = vweird.f32 %v1686
  %vm1693 = vmor %vm1691, %vm1692
  %v1694 = vsel %vm1693, %v1686, %v1690
  %v1695 = vand.u32 2147483647, %v1530
  %vm1696 = vcmp.eq.f32.partialorder %v1695, 8.507059e+37
  %v1697 = vand.u32 %v1530, 2147483648
  %v1698 = vor.u32 1.1754944e-38, %v1697
  %v1699 = vsel %vm1696, %v1698, %v1694
  %v1700 = vmul.f32 1.0, %v1699
  %v1701 = vrcp.pop %v1531
  %v1702 = vmul.f32 %v1531, %v1701
  %v1703 = vsub.f32 1.0, %v1702
  %v1704 = vmul.f32 %v1701, %v1703
  %v1705 = vadd.f32 %v1701, %v1704
  %vm1706 = vweird.f32 %v1531
  %vm1707 = vweird.f32 %v1701
  %vm1708 = vmor %vm1706, %vm1707
  %v1709 = vsel %vm1708, %v1701, %v1705
  %v1710 = vand.u32 2147483647, %v1531
  %vm1711 = vcmp.eq.f32.partialorder %v1710, 8.507059e+37
  %v1712 = vand.u32 %v1531, 2147483648
  %v1713 = vor.u32 1.1754944e-38, %v1712
  %v1714 = vsel %vm1711, %v1713, %v1709
  %v1715 = vmul.f32 1.0, %v1714
  %v1716 = vrcp.pop %v1532
  %v1717 = vmul.f32 %v1532, %v1716
  %v1718 = vsub.f32 1.0, %v1717
  %v1719 = vmul.f32 %v1716, %v1718
  %v1720 = vadd.f32 %v1716, %v1719
  %vm1721 = vweird.f32 %v1532
  %vm1722 = vweird.f32 %v1716
  %vm1723 = vmor %vm1721, %vm1722
  %v1724 = vsel %vm1723, %v1716, %v1720
  %v1725 = vand.u32 2147483647, %v1532
  %vm1726 = vcmp.eq.f32.partialorder %v1725, 8.507059e+37
  %v1727 = vand.u32 %v1532, 2147483648
  %v1728 = vor.u32 1.1754944e-38, %v1727
  %v1729 = vsel %vm1726, %v1728, %v1724
  %v1730 = vmul.f32 1.0, %v1729
  %v1731 = vrcp.pop %v1533
  %v1732 = vmul.f32 %v1533, %v1731
  %v1733 = vsub.f32 1.0, %v1732
  %v1734 = vmul.f32 %v1731, %v1733
  %v1735 = vadd.f32 %v1731, %v1734
  %vm1736 = vweird.f32 %v1533
  %vm1737 = vweird.f32 %v1731
  %vm1738 = vmor %vm1736, %vm1737
  %v1739 = vsel %vm1738, %v1731, %v1735
  %v1740 = vand.u32 2147483647, %v1533
  %vm1741 = vcmp.eq.f32.partialorder %v1740, 8.507059e+37
  %v1742 = vand.u32 %v1533, 2147483648
  %v1743 = vor.u32 1.1754944e-38, %v1742
  %v1744 = vsel %vm1741, %v1743, %v1739
  %v1745 = vmul.f32 1.0, %v1744
  %v1746 = vrcp.pop %v1534
  %v1747 = vmul.f32 %v1534, %v1746
  %v1748 = vsub.f32 1.0, %v1747
  %v1749 = vmul.f32 %v1746, %v1748
  %v1750 = vadd.f32 %v1746, %v1749
  %vm1751 = vweird.f32 %v1534
  %vm1752 = vweird.f32 %v1746
  %vm1753 = vmor %vm1751, %vm1752
  %v1754 = vsel %vm1753, %v1746, %v1750
  %v1755 = vand.u32 2147483647, %v1534
  %vm1756 = vcmp.eq.f32.partialorder %v1755, 8.507059e+37
  %v1757 = vand.u32 %v1534, 2147483648
  %v1758 = vor.u32 1.1754944e-38, %v1757
  %v1759 = vsel %vm1756, %v1758, %v1754
  %v1760 = vmul.f32 1.0, %v1759
  %v1761 = vrcp.pop %v1535
  %v1762 = vmul.f32 %v1535, %v1761
  %v1763 = vsub.f32 1.0, %v1762
  %v1764 = vmul.f32 %v1761, %v1763
  %v1765 = vadd.f32 %v1761, %v1764
  %vm1766 = vweird.f32 %v1535
  %vm1767 = vweird.f32 %v1761
  %vm1768 = vmor %vm1766, %vm1767
  %v1769 = vsel %vm1768, %v1761, %v1765
  %v1770 = vand.u32 2147483647, %v1535
  %vm1771 = vcmp.eq.f32.partialorder %v1770, 8.507059e+37
  %v1772 = vand.u32 %v1535, 2147483648
  %v1773 = vor.u32 1.1754944e-38, %v1772
  %v1774 = vsel %vm1771, %v1773, %v1769
  %v1775 = vmul.f32 1.0, %v1774
  %v1776 = vtanh.pop %v1106
  %v1777 = vtanh.pop %v1110
  %v1778 = vtanh.pop %v1114
  %v1779 = vtanh.pop %v1118
  %v1780 = vtanh.pop %v1122
  %v1781 = vtanh.pop %v1126
  %v1782 = vtanh.pop %v1130
  %v1783 = vtanh.pop %v1134
  %v1784 = vtanh.pop %v1138
  %v1785 = vtanh.pop %v1142
  %v1786 = vtanh.pop %v1146
  %v1787 = vtanh.pop %v1150
  %v1788 = vtanh.pop %v1154
  %v1789 = vtanh.pop %v1158
  %v1790 = vtanh.pop %v1162
  %v1791 = vtanh.pop %v1166
  %v1792 = vxor.u32 %v1107, 2147483648
  %v1793 = vxor.u32 %v1111, 2147483648
  %v1794 = vxor.u32 %v1115, 2147483648
  %v1795 = vxor.u32 %v1119, 2147483648
  %v1796 = vxor.u32 %v1123, 2147483648
  %v1797 = vxor.u32 %v1127, 2147483648
  %v1798 = vxor.u32 %v1131, 2147483648
  %v1799 = vxor.u32 %v1135, 2147483648
  %v1800 = vxor.u32 %v1139, 2147483648
  %v1801 = vxor.u32 %v1143, 2147483648
  %v1802 = vxor.u32 %v1147, 2147483648
  %v1803 = vxor.u32 %v1151, 2147483648
  %v1804 = vxor.u32 %v1155, 2147483648
  %v1805 = vxor.u32 %v1159, 2147483648
  %v1806 = vxor.u32 %v1163, 2147483648
  %v1807 = vxor.u32 %v1167, 2147483648
  %v1808 = vmul.f32 %v1792, 1.442695
  %v1809 = vpow.pop %v1808
  %v1810 = vmul.f32 %v1793, 1.442695
  %v1811 = vpow.pop %v1810
  %v1812 = vmul.f32 %v1794, 1.442695
  %v1813 = vpow.pop %v1812
  %v1814 = vmul.f32 %v1795, 1.442695
  %v1815 = vpow.pop %v1814
  %v1816 = vmul.f32 %v1796, 1.442695
  %v1817 = vpow.pop %v1816
  %v1818 = vmul.f32 %v1797, 1.442695
  %v1819 = vpow.pop %v1818
  %v1820 = vmul.f32 %v1798, 1.442695
  %v1821 = vpow.pop %v1820
  %v1822 = vmul.f32 %v1799, 1.442695
  %v1823 = vpow.pop %v1822
  %v1824 = vmul.f32 %v1800, 1.442695
  %v1825 = vpow.pop %v1824
  %v1826 = vmul.f32 %v1801, 1.442695
  %v1827 = vpow.pop %v1826
  %v1828 = vmul.f32 %v1802, 1.442695
  %v1829 = vpow.pop %v1828
  %v1830 = vmul.f32 %v1803, 1.442695
  %v1831 = vpow.pop %v1830
  %v1832 = vmul.f32 %v1804, 1.442695
  %v1833 = vpow.pop %v1832
  %v1834 = vmul.f32 %v1805, 1.442695
  %v1835 = vpow.pop %v1834
  %v1836 = vmul.f32 %v1806, 1.442695
  %v1837 = vpow.pop %v1836
  %v1838 = vmul.f32 %v1807, 1.442695
  %v1839 = vpow.pop %v1838
  %v1840 = vadd.f32 %v1809, 1.0
  %v1841 = vadd.f32 %v1811, 1.0
  %v1842 = vadd.f32 %v1813, 1.0
  %v1843 = vadd.f32 %v1815, 1.0
  %v1844 = vadd.f32 %v1817, 1.0
  %v1845 = vadd.f32 %v1819, 1.0
  %v1846 = vadd.f32 %v1821, 1.0
  %v1847 = vadd.f32 %v1823, 1.0
  %v1848 = vadd.f32 %v1825, 1.0
  %v1849 = vadd.f32 %v1827, 1.0
  %v1850 = vadd.f32 %v1829, 1.0
  %v1851 = vadd.f32 %v1831, 1.0
  %v1852 = vadd.f32 %v1833, 1.0
  %v1853 = vadd.f32 %v1835, 1.0
  %v1854 = vadd.f32 %v1837, 1.0
  %v1855 = vadd.f32 %v1839, 1.0
  %v1856 = vrcp.pop %v1840
  %v1857 = vmul.f32 %v1840, %v1856
  %v1858 = vsub.f32 1.0, %v1857
  %v1859 = vmul.f32 %v1856, %v1858
  %v1860 = vadd.f32 %v1856, %v1859
  %vm1861 = vweird.f32 %v1840
  %vm1862 = vweird.f32 %v1856
  %vm1863 = vmor %vm1861, %vm1862
  %v1864 = vsel %vm1863, %v1856, %v1860
  %v1865 = vand.u32 2147483647, %v1840
  %vm1866 = vcmp.eq.f32.partialorder %v1865, 8.507059e+37
  %v1867 = vand.u32 %v1840, 2147483648
  %v1868 = vor.u32 1.1754944e-38, %v1867
  %v1869 = vsel %vm1866, %v1868, %v1864
  %v1870 = vmul.f32 1.0, %v1869
  %v1871 = vrcp.pop %v1841
  %v1872 = vmul.f32 %v1841, %v1871
  %v1873 = vsub.f32 1.0, %v1872
  %v1874 = vmul.f32 %v1871, %v1873
  %v1875 = vadd.f32 %v1871, %v1874
  %vm1876 = vweird.f32 %v1841
  %vm1877 = vweird.f32 %v1871
  %vm1878 = vmor %vm1876, %vm1877
  %v1879 = vsel %vm1878, %v1871, %v1875
  %v1880 = vand.u32 2147483647, %v1841
  %vm1881 = vcmp.eq.f32.partialorder %v1880, 8.507059e+37
  %v1882 = vand.u32 %v1841, 2147483648
  %v1883 = vor.u32 1.1754944e-38, %v1882
  %v1884 = vsel %vm1881, %v1883, %v1879
  %v1885 = vmul.f32 1.0, %v1884
  %v1886 = vrcp.pop %v1842
  %v1887 = vmul.f32 %v1842, %v1886
  %v1888 = vsub.f32 1.0, %v1887
  %v1889 = vmul.f32 %v1886, %v1888
  %v1890 = vadd.f32 %v1886, %v1889
  %vm1891 = vweird.f32 %v1842
  %vm1892 = vweird.f32 %v1886
  %vm1893 = vmor %vm1891, %vm1892
  %v1894 = vsel %vm1893, %v1886, %v1890
  %v1895 = vand.u32 2147483647, %v1842
  %vm1896 = vcmp.eq.f32.partialorder %v1895, 8.507059e+37
  %v1897 = vand.u32 %v1842, 2147483648
  %v1898 = vor.u32 1.1754944e-38, %v1897
  %v1899 = vsel %vm1896, %v1898, %v1894
  %v1900 = vmul.f32 1.0, %v1899
  %v1901 = vrcp.pop %v1843
  %v1902 = vmul.f32 %v1843, %v1901
  %v1903 = vsub.f32 1.0, %v1902
  %v1904 = vmul.f32 %v1901, %v1903
  %v1905 = vadd.f32 %v1901, %v1904
  %vm1906 = vweird.f32 %v1843
  %vm1907 = vweird.f32 %v1901
  %vm1908 = vmor %vm1906, %vm1907
  %v1909 = vsel %vm1908, %v1901, %v1905
  %v1910 = vand.u32 2147483647, %v1843
  %vm1911 = vcmp.eq.f32.partialorder %v1910, 8.507059e+37
  %v1912 = vand.u32 %v1843, 2147483648
  %v1913 = vor.u32 1.1754944e-38, %v1912
  %v1914 = vsel %vm1911, %v1913, %v1909
  %v1915 = vmul.f32 1.0, %v1914
  %v1916 = vrcp.pop %v1844
  %v1917 = vmul.f32 %v1844, %v1916
  %v1918 = vsub.f32 1.0, %v1917
  %v1919 = vmul.f32 %v1916, %v1918
  %v1920 = vadd.f32 %v1916, %v1919
  %vm1921 = vweird.f32 %v1844
  %vm1922 = vweird.f32 %v1916
  %vm1923 = vmor %vm1921, %vm1922
  %v1924 = vsel %vm1923, %v1916, %v1920
  %v1925 = vand.u32 2147483647, %v1844
  %vm1926 = vcmp.eq.f32.partialorder %v1925, 8.507059e+37
  %v1927 = vand.u32 %v1844, 2147483648
  %v1928 = vor.u32 1.1754944e-38, %v1927
  %v1929 = vsel %vm1926, %v1928, %v1924
  %v1930 = vmul.f32 1.0, %v1929
  %v1931 = vrcp.pop %v1845
  %v1932 = vmul.f32 %v1845, %v1931
  %v1933 = vsub.f32 1.0, %v1932
  %v1934 = vmul.f32 %v1931, %v1933
  %v1935 = vadd.f32 %v1931, %v1934
  %vm1936 = vweird.f32 %v1845
  %vm1937 = vweird.f32 %v1931
  %vm1938 = vmor %vm1936, %vm1937
  %v1939 = vsel %vm1938, %v1931, %v1935
  %v1940 = vand.u32 2147483647, %v1845
  %vm1941 = vcmp.eq.f32.partialorder %v1940, 8.507059e+37
  %v1942 = vand.u32 %v1845, 2147483648
  %v1943 = vor.u32 1.1754944e-38, %v1942
  %v1944 = vsel %vm1941, %v1943, %v1939
  %v1945 = vmul.f32 1.0, %v1944
  %v1946 = vrcp.pop %v1846
  %v1947 = vmul.f32 %v1846, %v1946
  %v1948 = vsub.f32 1.0, %v1947
  %v1949 = vmul.f32 %v1946, %v1948
  %v1950 = vadd.f32 %v1946, %v1949
  %vm1951 = vweird.f32 %v1846
  %vm1952 = vweird.f32 %v1946
  %vm1953 = vmor %vm1951, %vm1952
  %v1954 = vsel %vm1953, %v1946, %v1950
  %v1955 = vand.u32 2147483647, %v1846
  %vm1956 = vcmp.eq.f32.partialorder %v1955, 8.507059e+37
  %v1957 = vand.u32 %v1846, 2147483648
  %v1958 = vor.u32 1.1754944e-38, %v1957
  %v1959 = vsel %vm1956, %v1958, %v1954
  %v1960 = vmul.f32 1.0, %v1959
  %v1961 = vrcp.pop %v1847
  %v1962 = vmul.f32 %v1847, %v1961
  %v1963 = vsub.f32 1.0, %v1962
  %v1964 = vmul.f32 %v1961, %v1963
  %v1965 = vadd.f32 %v1961, %v1964
  %vm1966 = vweird.f32 %v1847
  %vm1967 = vweird.f32 %v1961
  %vm1968 = vmor %vm1966, %vm1967
  %v1969 = vsel %vm1968, %v1961, %v1965
  %v1970 = vand.u32 2147483647, %v1847
  %vm1971 = vcmp.eq.f32.partialorder %v1970, 8.507059e+37
  %v1972 = vand.u32 %v1847, 2147483648
  %v1973 = vor.u32 1.1754944e-38, %v1972
  %v1974 = vsel %vm1971, %v1973, %v1969
  %v1975 = vmul.f32 1.0, %v1974
  %v1976 = vrcp.pop %v1848
  %v1977 = vmul.f32 %v1848, %v1976
  %v1978 = vsub.f32 1.0, %v1977
  %v1979 = vmul.f32 %v1976, %v1978
  %v1980 = vadd.f32 %v1976, %v1979
  %vm1981 = vweird.f32 %v1848
  %vm1982 = vweird.f32 %v1976
  %vm1983 = vmor %vm1981, %vm1982
  %v1984 = vsel %vm1983, %v1976, %v1980
  %v1985 = vand.u32 2147483647, %v1848
  %vm1986 = vcmp.eq.f32.partialorder %v1985, 8.507059e+37
  %v1987 = vand.u32 %v1848, 2147483648
  %v1988 = vor.u32 1.1754944e-38, %v1987
  %v1989 = vsel %vm1986, %v1988, %v1984
  %v1990 = vmul.f32 1.0, %v1989
  %v1991 = vrcp.pop %v1849
  %v1992 = vmul.f32 %v1849, %v1991
  %v1993 = vsub.f32 1.0, %v1992
  %v1994 = vmul.f32 %v1991, %v1993
  %v1995 = vadd.f32 %v1991, %v1994
  %vm1996 = vweird.f32 %v1849
  %vm1997 = vweird.f32 %v1991
  %vm1998 = vmor %vm1996, %vm1997
  %v1999 = vsel %vm1998, %v1991, %v1995
  %v2000 = vand.u32 2147483647, %v1849
  %vm2001 = vcmp.eq.f32.partialorder %v2000, 8.507059e+37
  %v2002 = vand.u32 %v1849, 2147483648
  %v2003 = vor.u32 1.1754944e-38, %v2002
  %v2004 = vsel %vm2001, %v2003, %v1999
  %v2005 = vmul.f32 1.0, %v2004
  %v2006 = vrcp.pop %v1850
  %v2007 = vmul.f32 %v1850, %v2006
  %v2008 = vsub.f32 1.0, %v2007
  %v2009 = vmul.f32 %v2006, %v2008
  %v2010 = vadd.f32 %v2006, %v2009
  %vm2011 = vweird.f32 %v1850
  %vm2012 = vweird.f32 %v2006
  %vm2013 = vmor %vm2011, %vm2012
  %v2014 = vsel %vm2013, %v2006, %v2010
  %v2015 = vand.u32 2147483647, %v1850
  %vm2016 = vcmp.eq.f32.partialorder %v2015, 8.507059e+37
  %v2017 = vand.u32 %v1850, 2147483648
  %v2018 = vor.u32 1.1754944e-38, %v2017
  %v2019 = vsel %vm2016, %v2018, %v2014
  %v2020 = vmul.f32 1.0, %v2019
  %v2021 = vrcp.pop %v1851
  %v2022 = vmul.f32 %v1851, %v2021
  %v2023 = vsub.f32 1.0, %v2022
  %v2024 = vmul.f32 %v2021, %v2023
  %v2025 = vadd.f32 %v2021, %v2024
  %vm2026 = vweird.f32 %v1851
  %vm2027 = vweird.f32 %v2021
  %vm2028 = vmor %vm2026, %vm2027
  %v2029 = vsel %vm2028, %v2021, %v2025
  %v2030 = vand.u32 2147483647, %v1851
  %vm2031 = vcmp.eq.f32.partialorder %v2030, 8.507059e+37
  %v2032 = vand.u32 %v1851, 2147483648
  %v2033 = vor.u32 1.1754944e-38, %v2032
  %v2034 = vsel %vm2031, %v2033, %v2029
  %v2035 = vmul.f32 1.0, %v2034
  %v2036 = vrcp.pop %v1852
  %v2037 = vmul.f32 %v1852, %v2036
  %v2038 = vsub.f32 1.0, %v2037
  %v2039 = vmul.f32 %v2036, %v2038
  %v2040 = vadd.f32 %v2036, %v2039
  %vm2041 = vweird.f32 %v1852
  %vm2042 = vweird.f32 %v2036
  %vm2043 = vmor %vm2041, %vm2042
  %v2044 = vsel %vm2043, %v2036, %v2040
  %v2045 = vand.u32 2147483647, %v1852
  %vm2046 = vcmp.eq.f32.partialorder %v2045, 8.507059e+37
  %v2047 = vand.u32 %v1852, 2147483648
  %v2048 = vor.u32 1.1754944e-38, %v2047
  %v2049 = vsel %vm2046, %v2048, %v2044
  %v2050 = vmul.f32 1.0, %v2049
  %v2051 = vrcp.pop %v1853
  %v2052 = vmul.f32 %v1853, %v2051
  %v2053 = vsub.f32 1.0, %v2052
  %v2054 = vmul.f32 %v2051, %v2053
  %v2055 = vadd.f32 %v2051, %v2054
  %vm2056 = vweird.f32 %v1853
  %vm2057 = vweird.f32 %v2051
  %vm2058 = vmor %vm2056, %vm2057
  %v2059 = vsel %vm2058, %v2051, %v2055
  %v2060 = vand.u32 2147483647, %v1853
  %vm2061 = vcmp.eq.f32.partialorder %v2060, 8.507059e+37
  %v2062 = vand.u32 %v1853, 2147483648
  %v2063 = vor.u32 1.1754944e-38, %v2062
  %v2064 = vsel %vm2061, %v2063, %v2059
  %v2065 = vmul.f32 1.0, %v2064
  %v2066 = vrcp.pop %v1854
  %v2067 = vmul.f32 %v1854, %v2066
  %v2068 = vsub.f32 1.0, %v2067
  %v2069 = vmul.f32 %v2066, %v2068
  %v2070 = vadd.f32 %v2066, %v2069
  %vm2071 = vweird.f32 %v1854
  %vm2072 = vweird.f32 %v2066
  %vm2073 = vmor %vm2071, %vm2072
  %v2074 = vsel %vm2073, %v2066, %v2070
  %v2075 = vand.u32 2147483647, %v1854
  %vm2076 = vcmp.eq.f32.partialorder %v2075, 8.507059e+37
  %v2077 = vand.u32 %v1854, 2147483648
  %v2078 = vor.u32 1.1754944e-38, %v2077
  %v2079 = vsel %vm2076, %v2078, %v2074
  %v2080 = vmul.f32 1.0, %v2079
  %v2081 = vrcp.pop %v1855
  %v2082 = vmul.f32 %v1855, %v2081
  %v2083 = vsub.f32 1.0, %v2082
  %v2084 = vmul.f32 %v2081, %v2083
  %v2085 = vadd.f32 %v2081, %v2084
  %vm2086 = vweird.f32 %v1855
  %vm2087 = vweird.f32 %v2081
  %vm2088 = vmor %vm2086, %vm2087
  %v2089 = vsel %vm2088, %v2081, %v2085
  %v2090 = vand.u32 2147483647, %v1855
  %vm2091 = vcmp.eq.f32.partialorder %v2090, 8.507059e+37
  %v2092 = vand.u32 %v1855, 2147483648
  %v2093 = vor.u32 1.1754944e-38, %v2092
  %v2094 = vsel %vm2091, %v2093, %v2089
  %v2095 = vmul.f32 1.0, %v2094
  %v2096 = vmul.f32 %v1550, %v294
  %v2097 = vmul.f32 %v1565, %v295
  %v2098 = vmul.f32 %v1580, %v296
  %v2099 = vmul.f32 %v1595, %v297
  %v2100 = vmul.f32 %v1610, %v298
  %v2101 = vmul.f32 %v1625, %v299
  %v2102 = vmul.f32 %v1640, %v300
  %v2103 = vmul.f32 %v1655, %v301
  %v2104 = vmul.f32 %v1670, %v302
  %v2105 = vmul.f32 %v1685, %v303
  %v2106 = vmul.f32 %v1700, %v304
  %v2107 = vmul.f32 %v1715, %v305
  %v2108 = vmul.f32 %v1730, %v306
  %v2109 = vmul.f32 %v1745, %v307
  %v2110 = vmul.f32 %v1760, %v308
  %v2111 = vmul.f32 %v1775, %v309
  %v2112 = vmul.f32 %v1246, %v1776
  %v2113 = vmul.f32 %v1261, %v1777
  %v2114 = vmul.f32 %v1276, %v1778
  %v2115 = vmul.f32 %v1291, %v1779
  %v2116 = vmul.f32 %v1306, %v1780
  %v2117 = vmul.f32 %v1321, %v1781
  %v2118 = vmul.f32 %v1336, %v1782
  %v2119 = vmul.f32 %v1351, %v1783
  %v2120 = vmul.f32 %v1366, %v1784
  %v2121 = vmul.f32 %v1381, %v1785
  %v2122 = vmul.f32 %v1396, %v1786
  %v2123 = vmul.f32 %v1411, %v1787
  %v2124 = vmul.f32 %v1426, %v1788
  %v2125 = vmul.f32 %v1441, %v1789
  %v2126 = vmul.f32 %v1456, %v1790
  %v2127 = vmul.f32 %v1471, %v1791
  %v2128 = vadd.f32 %v2096, %v2112
  %v2129 = vadd.f32 %v2097, %v2113
  %v2130 = vadd.f32 %v2098, %v2114
  %v2131 = vadd.f32 %v2099, %v2115
  %v2132 = vadd.f32 %v2100, %v2116
  %v2133 = vadd.f32 %v2101, %v2117
  %v2134 = vadd.f32 %v2102, %v2118
  %v2135 = vadd.f32 %v2103, %v2119
  %v2136 = vadd.f32 %v2104, %v2120
  %v2137 = vadd.f32 %v2105, %v2121
  %v2138 = vadd.f32 %v2106, %v2122
  %v2139 = vadd.f32 %v2107, %v2123
  %v2140 = vadd.f32 %v2108, %v2124
  %v2141 = vadd.f32 %v2109, %v2125
  %v2142 = vadd.f32 %v2110, %v2126
  %v2143 = vadd.f32 %v2111, %v2127
  %v2144 = vtanh.pop %v2128
  %v2145 = vtanh.pop %v2129
  %v2146 = vtanh.pop %v2130
  %v2147 = vtanh.pop %v2131
  %v2148 = vtanh.pop %v2132
  %v2149 = vtanh.pop %v2133
  %v2150 = vtanh.pop %v2134
  %v2151 = vtanh.pop %v2135
  %v2152 = vtanh.pop %v2136
  %v2153 = vtanh.pop %v2137
  %v2154 = vtanh.pop %v2138
  %v2155 = vtanh.pop %v2139
  %v2156 = vtanh.pop %v2140
  %v2157 = vtanh.pop %v2141
  %v2158 = vtanh.pop %v2142
  %v2159 = vtanh.pop %v2143
  %v2160 = vmul.f32 %v1870, %v2144
  %v2161 = vmul.f32 %v1885, %v2145
  %v2162 = vmul.f32 %v1900, %v2146
  %v2163 = vmul.f32 %v1915, %v2147
  %v2164 = vmul.f32 %v1930, %v2148
  %v2165 = vmul.f32 %v1945, %v2149
  %v2166 = vmul.f32 %v1960, %v2150
  %v2167 = vmul.f32 %v1975, %v2151
  %v2168 = vmul.f32 %v1990, %v2152
  %v2169 = vmul.f32 %v2005, %v2153
  %v2170 = vmul.f32 %v2020, %v2154
  %v2171 = vmul.f32 %v2035, %v2155
  %v2172 = vmul.f32 %v2050, %v2156
  %v2173 = vmul.f32 %v2065, %v2157
  %v2174 = vmul.f32 %v2080, %v2158
  %v2175 = vmul.f32 %v2095, %v2159
  %vm2176 = vcmp.lt.s32.totalorder %v52, 32
  %v2177 = vsel %vm2176, %v2128, 0.0
  %v2178 = vsel %vm2176, %v2129, 0.0
  %v2179 = vsel %vm2176, %v2130, 0.0
  %v2180 = vsel %vm2176, %v2131, 0.0
  %v2181 = vsel %vm2176, %v2132, 0.0
  %v2182 = vsel %vm2176, %v2133, 0.0
  %v2183 = vsel %vm2176, %v2134, 0.0
  %v2184 = vsel %vm2176, %v2135, 0.0
  %v2185 = vsel %vm2176, %v2136, 0.0
  %v2186 = vsel %vm2176, %v2137, 0.0
  %v2187 = vsel %vm2176, %v2138, 0.0
  %v2188 = vsel %vm2176, %v2139, 0.0
  %v2189 = vsel %vm2176, %v2140, 0.0
  %v2190 = vsel %vm2176, %v2141, 0.0
  %v2191 = vsel %vm2176, %v2142, 0.0
  %v2192 = vsel %vm2176, %v2143, 0.0
  %v2193 = vsel %vm2176, %v2160, 0.0
  %v2194 = vsel %vm2176, %v2161, 0.0
  %v2195 = vsel %vm2176, %v2162, 0.0
  %v2196 = vsel %vm2176, %v2163, 0.0
  %v2197 = vsel %vm2176, %v2164, 0.0
  %v2198 = vsel %vm2176, %v2165, 0.0
  %v2199 = vsel %vm2176, %v2166, 0.0
  %v2200 = vsel %vm2176, %v2167, 0.0
  %v2201 = vsel %vm2176, %v2168, 0.0
  %v2202 = vsel %vm2176, %v2169, 0.0
  %v2203 = vsel %vm2176, %v2170, 0.0
  %v2204 = vsel %vm2176, %v2171, 0.0
  %v2205 = vsel %vm2176, %v2172, 0.0
  %v2206 = vsel %vm2176, %v2173, 0.0
  %v2207 = vsel %vm2176, %v2174, 0.0
  %v2208 = vsel %vm2176, %v2175, 0.0
  %v2209 = vpack.c.bf16 %v2194, %v2193
  %v2210 = vpack.c.bf16 %v2196, %v2195
  %v2211 = vpack.c.bf16 %v2198, %v2197
  %v2212 = vpack.c.bf16 %v2200, %v2199
  %v2213 = vpack.c.bf16 %v2202, %v2201
  %v2214 = vpack.c.bf16 %v2204, %v2203
  %v2215 = vpack.c.bf16 %v2206, %v2205
  %v2216 = vpack.c.bf16 %v2208, %v2207
  %v2217 = vld [vmem:[%s7] sm:$0xf]
  %v2218 = vld [vmem:[%s7 + $0x4] sm:$0xf]
  %v2219 = vld [vmem:[%s7 + $0x8] sm:$0xf]
  %v2220 = vld [vmem:[%s7 + $0xc] sm:$0xf]
  %v2221 = vld [vmem:[%s7 + $0x10] sm:$0xf]
  %v2222 = vld [vmem:[%s7 + $0x14] sm:$0xf]
  %v2223 = vld [vmem:[%s7 + $0x18] sm:$0xf]
  %v2224 = vld [vmem:[%s7 + $0x1c] sm:$0xf]
  %v2225 = vld [vmem:[%s7 + $0x20] sm:$0xf]
  %v2226 = vld [vmem:[%s7 + $0x24] sm:$0xf]
  %v2227 = vld [vmem:[%s7 + $0x28] sm:$0xf]
  %v2228 = vld [vmem:[%s7 + $0x2c] sm:$0xf]
  %v2229 = vld [vmem:[%s7 + $0x30] sm:$0xf]
  %v2230 = vld [vmem:[%s7 + $0x34] sm:$0xf]
  %v2231 = vld [vmem:[%s7 + $0x38] sm:$0xf]
  %v2232 = vld [vmem:[%s7 + $0x3c] sm:$0xf]
  %v2233 = vld [vmem:[%s8] sm:$0x1]
  %v2235 = vperm.slane %v2233, 0
  %v2253 = vunpack.c.l.b16 %v2217
  %v2254 = vunpack.c.l.b16 %v2218
  %v2255 = vunpack.c.l.b16 %v2219
  %v2256 = vunpack.c.l.b16 %v2220
  %v2257 = vunpack.c.l.b16 %v2221
  %v2258 = vunpack.c.l.b16 %v2222
  %v2259 = vunpack.c.l.b16 %v2223
  %v2260 = vunpack.c.l.b16 %v2224
  %v2261 = vunpack.c.l.b16 %v2225
  %v2262 = vunpack.c.l.b16 %v2226
  %v2263 = vunpack.c.l.b16 %v2227
  %v2264 = vunpack.c.l.b16 %v2228
  %v2265 = vunpack.c.l.b16 %v2229
  %v2266 = vunpack.c.l.b16 %v2230
  %v2267 = vunpack.c.l.b16 %v2231
  %v2268 = vunpack.c.l.b16 %v2232
  %v2269 = vpack.c.b16 %v2254, %v2253
  %v2270 = vpack.c.b16 %v2256, %v2255
  %v2271 = vpack.c.b16 %v2258, %v2257
  %v2272 = vpack.c.b16 %v2260, %v2259
  %v2273 = vpack.c.b16 %v2262, %v2261
  %v2274 = vpack.c.b16 %v2264, %v2263
  %v2275 = vpack.c.b16 %v2266, %v2265
  %v2276 = vpack.c.b16 %v2268, %v2267
  %2285 = vmatpush.bf16.msra.mxu0 %v2276
  %2286 = vmatpush.bf16.msra.mxu0 %v2275
  %2287 = vmatpush.bf16.msra.mxu0 %v2274
  %2288 = vmatpush.bf16.msra.mxu0 %v2273
  %2289 = vmatpush.bf16.msra.mxu0 %v2272
  %2290 = vmatpush.bf16.msra.mxu0 %v2271
  %2291 = vmatpush.bf16.msra.mxu0 %v2270
  %2292 = vmatpush.bf16.msra.mxu0 %v2269
  %2293 = vmatmul.bf16.gmra.mxu0 %v2209
  %v2294 = vpop.f32.mrf.mxu0
  %v2295 = vadd.f32 %v2235, %v2294
  %v2296 = vpop.f32.mrf.mxu0
  %v2297 = vadd.f32 %v2235, %v2296
  %2298 = vmatmul.bf16.gmra.mxu0 %v2210
  %v2299 = vpop.f32.mrf.mxu0
  %v2300 = vadd.f32 %v2235, %v2299
  %v2301 = vpop.f32.mrf.mxu0
  %v2302 = vadd.f32 %v2235, %v2301
  %2303 = vmatmul.bf16.gmra.mxu0 %v2211
  %v2304 = vpop.f32.mrf.mxu0
  %v2305 = vadd.f32 %v2235, %v2304
  %v2306 = vpop.f32.mrf.mxu0
  %v2307 = vadd.f32 %v2235, %v2306
  %2308 = vmatmul.bf16.gmra.mxu0 %v2212
  %v2309 = vpop.f32.mrf.mxu0
  %v2310 = vadd.f32 %v2235, %v2309
  %v2311 = vpop.f32.mrf.mxu0
  %v2312 = vadd.f32 %v2235, %v2311
  %2313 = vmatmul.bf16.gmra.mxu0 %v2213
  %v2314 = vpop.f32.mrf.mxu0
  %v2315 = vadd.f32 %v2235, %v2314
  %v2316 = vpop.f32.mrf.mxu0
  %v2317 = vadd.f32 %v2235, %v2316
  %2318 = vmatmul.bf16.gmra.mxu0 %v2214
  %v2319 = vpop.f32.mrf.mxu0
  %v2320 = vadd.f32 %v2235, %v2319
  %v2321 = vpop.f32.mrf.mxu0
  %v2322 = vadd.f32 %v2235, %v2321
  %2323 = vmatmul.bf16.gmra.mxu0 %v2215
  %v2324 = vpop.f32.mrf.mxu0
  %v2325 = vadd.f32 %v2235, %v2324
  %v2326 = vpop.f32.mrf.mxu0
  %v2327 = vadd.f32 %v2235, %v2326
  %2328 = vmatmul.bf16.gmra.mxu0 %v2216
  %v2329 = vpop.f32.mrf.mxu0
  %v2330 = vadd.f32 %v2235, %v2329
  %v2331 = vpop.f32.mrf.mxu0
  %v2332 = vadd.f32 %v2235, %v2331
  %2333 = vdwg.mxu0
  %2334 = vst [vmem:[%s9] sm:$0xff] %v2295
  %2335 = vst [vmem:[%s9 + $0x8] sm:$0xff] %v2297
  %2336 = vst [vmem:[%s9 + $0x10] sm:$0xff] %v2300
  %2337 = vst [vmem:[%s9 + $0x18] sm:$0xff] %v2302
  %2338 = vst [vmem:[%s9 + $0x20] sm:$0xff] %v2305
  %2339 = vst [vmem:[%s9 + $0x28] sm:$0xff] %v2307
  %2340 = vst [vmem:[%s9 + $0x30] sm:$0xff] %v2310
  %2341 = vst [vmem:[%s9 + $0x38] sm:$0xff] %v2312
  %2342 = vst [vmem:[%s9 + $0x40] sm:$0xff] %v2315
  %2343 = vst [vmem:[%s9 + $0x48] sm:$0xff] %v2317
  %2344 = vst [vmem:[%s9 + $0x50] sm:$0xff] %v2320
  %2345 = vst [vmem:[%s9 + $0x58] sm:$0xff] %v2322
  %2346 = vst [vmem:[%s9 + $0x60] sm:$0xff] %v2325
  %2347 = vst [vmem:[%s9 + $0x68] sm:$0xff] %v2327
  %2348 = vst [vmem:[%s9 + $0x70] sm:$0xff] %v2330
  %2349 = vst [vmem:[%s9 + $0x78] sm:$0xff] %v2332
  %2350 = vst [vmem:[%s10] sm:$0xff] %v2193
  %2351 = vst [vmem:[%s10 + $0x8] sm:$0xff] %v2194
  %2352 = vst [vmem:[%s10 + $0x10] sm:$0xff] %v2195
  %2353 = vst [vmem:[%s10 + $0x18] sm:$0xff] %v2196
  %2354 = vst [vmem:[%s10 + $0x20] sm:$0xff] %v2197
  %2355 = vst [vmem:[%s10 + $0x28] sm:$0xff] %v2198
  %2356 = vst [vmem:[%s10 + $0x30] sm:$0xff] %v2199
  %2357 = vst [vmem:[%s10 + $0x38] sm:$0xff] %v2200
  %2358 = vst [vmem:[%s10 + $0x40] sm:$0xff] %v2201
  %2359 = vst [vmem:[%s10 + $0x48] sm:$0xff] %v2202
  %2360 = vst [vmem:[%s10 + $0x50] sm:$0xff] %v2203
  %2361 = vst [vmem:[%s10 + $0x58] sm:$0xff] %v2204
  %2362 = vst [vmem:[%s10 + $0x60] sm:$0xff] %v2205
  %2363 = vst [vmem:[%s10 + $0x68] sm:$0xff] %v2206
  %2364 = vst [vmem:[%s10 + $0x70] sm:$0xff] %v2207
  %2365 = vst [vmem:[%s10 + $0x78] sm:$0xff] %v2208
  %2366 = vst [vmem:[%s11] sm:$0xff] %v2177
  %2367 = vst [vmem:[%s11 + $0x8] sm:$0xff] %v2178
  %2368 = vst [vmem:[%s11 + $0x10] sm:$0xff] %v2179
  %2369 = vst [vmem:[%s11 + $0x18] sm:$0xff] %v2180
  %2370 = vst [vmem:[%s11 + $0x20] sm:$0xff] %v2181
  %2371 = vst [vmem:[%s11 + $0x28] sm:$0xff] %v2182
  %2372 = vst [vmem:[%s11 + $0x30] sm:$0xff] %v2183
  %2373 = vst [vmem:[%s11 + $0x38] sm:$0xff] %v2184
  %2374 = vst [vmem:[%s11 + $0x40] sm:$0xff] %v2185
  %2375 = vst [vmem:[%s11 + $0x48] sm:$0xff] %v2186
  %2376 = vst [vmem:[%s11 + $0x50] sm:$0xff] %v2187
  %2377 = vst [vmem:[%s11 + $0x58] sm:$0xff] %v2188
  %2378 = vst [vmem:[%s11 + $0x60] sm:$0xff] %v2189
  %2379 = vst [vmem:[%s11 + $0x68] sm:$0xff] %v2190
  %2380 = vst [vmem:[%s11 + $0x70] sm:$0xff] %v2191
  %2381 = vst [vmem:[%s11 + $0x78] sm:$0xff] %v2192
  // Predicated region
  $region38: #{_lambda_.1} parent=0 // pred_check
    _
  $region39: #{_lambda_.1} parent=0 // pred_check_branch
    %2383 = sbr.rel (0) target = $region41
  $region40: #{_lambda_.1} parent=0 // pred_region
    _
  $region41: #{_lambda_.1} parent=0 // pred_fallthru
    _
  // Predicated region
  $region42: #{_lambda_.1} parent=0 // pred_check
    _
  $region43: #{_lambda_.1} parent=0 // pred_check_branch
    %2385 = sbr.rel (0) target = $region45
  $region44: #{_lambda_.1} parent=0 // pred_region
    _
  $region45: #{_lambda_.1} parent=0 // pred_fallthru
    _
  // Predicated region
  $region46: #{_lambda_.1} parent=0 // pred_check
    _
  $region47: #{_lambda_.1} parent=0 // pred_check_branch
    %2387 = sbr.rel (0) target = $region49
  $region48: #{_lambda_.1} parent=0 // pred_region
    _
  $region49: #{_lambda_.1} parent=0 // pred_fallthru
    _
  // Predicated region
  $region50: #{_lambda_.1} parent=0 // pred_check
    _
  $region51: #{_lambda_.1} parent=0 // pred_check_branch
    %2389 = sbr.rel (0) target = $region53
  $region52: #{_lambda_.1} parent=0 // pred_region
    _
  $region53: #{_lambda_.1} parent=0 // pred_fallthru
    _
  // Predicated region
  $region54: #{_lambda_.1} parent=0 // pred_check
    _
  $region55: #{_lambda_.1} parent=0 // pred_check_branch
    %2391 = sbr.rel (0) target = $region57
  $region56: #{_lambda_.1} parent=0 // pred_region
    _
  $region57: #{_lambda_.1} parent=0 // pred_fallthru
    _
  // Predicated region
  $region58: #{_lambda_.1} parent=0 // pred_check
    _
  $region59: #{_lambda_.1} parent=0 // pred_check_branch
    %2393 = sbr.rel (0) target = $region61
  $region60: #{_lambda_.1} parent=0 // pred_region
    _
  $region61: #{_lambda_.1} parent=0 // pred_fallthru
    _

</llo_original>
